<compile_context>
chip_gen: v5e
topology: v5e:2x2
jax: 0.10.0
libtpu: 0.0.40
codegen_flags: <defaults>
</compile_context>

<pallas_src>
import functools

import jax
import jax.numpy as jnp
from jax.experimental import pallas as pl
from jax.experimental.pallas import tpu as pltpu


_VMEM_LIMIT = 48 * 1024 * 1024  # leave headroom under v7x's 64 MiB physical VMEM


# ---------------------------------------------------------------------------
# Tiled GEMM kernels (bf16 inputs, fp32 VMEM accumulator)
# ---------------------------------------------------------------------------
def _gemm_bias_kernel(x_ref, w_ref, b_ref, o_ref, acc_ref):
    @pl.when(pl.program_id(2) == 0)
    def _():
        acc_ref[...] = jnp.zeros_like(acc_ref)

    acc_ref[...] += jnp.dot(x_ref[...], w_ref[...],
                            preferred_element_type=jnp.float32)

    @pl.when(pl.program_id(2) == pl.num_programs(2) - 1)
    def _():
        o_ref[...] = (acc_ref[...] + b_ref[...]).astype(o_ref.dtype)


def _gemm_kernel(x_ref, w_ref, o_ref, acc_ref):
    @pl.when(pl.program_id(2) == 0)
    def _():
        acc_ref[...] = jnp.zeros_like(acc_ref)

    acc_ref[...] += jnp.dot(x_ref[...], w_ref[...],
                            preferred_element_type=jnp.float32)

    @pl.when(pl.program_id(2) == pl.num_programs(2) - 1)
    def _():
        o_ref[...] = acc_ref[...].astype(o_ref.dtype)


def tiled_matmul(x, w, bias=None, *, tm=256, tn=256, tk=512,
                 out_dtype=jnp.bfloat16):
    """x: [M, K] (bf16), w: [K, N] (bf16), bias: [1, N] (f32) or None."""
    M, K = x.shape
    _, N = w.shape
    tm, tn, tk = min(tm, M), min(tn, N), min(tk, K)
    assert M % tm == 0 and N % tn == 0 and K % tk == 0, "tiles must divide dims"
    grid = (M // tm, N // tn, K // tk)

    in_specs = [
        pl.BlockSpec((tm, tk), lambda i, j, k: (i, k)),
        pl.BlockSpec((tk, tn), lambda i, j, k: (k, j)),
    ]
    args = [x, w]
    kernel = _gemm_kernel
    if bias is not None:
        in_specs.append(pl.BlockSpec((1, tn), lambda i, j, k: (0, j)))
        args.append(bias)
        kernel = _gemm_bias_kernel

    return pl.pallas_call(
        kernel,
        out_shape=jax.ShapeDtypeStruct((M, N), out_dtype),
        grid=grid,
        in_specs=in_specs,
        out_specs=pl.BlockSpec((tm, tn), lambda i, j, k: (i, j)),
        scratch_shapes=[pltpu.VMEM((tm, tn), jnp.float32)],
        compiler_params=pltpu.CompilerParams(
            dimension_semantics=("parallel", "parallel", "arbitrary"),
            vmem_limit_bytes=_VMEM_LIMIT,
        ),
    )(*args)


# ---------------------------------------------------------------------------
# Flash attention kernel: grid = (head, q_tile, kv_tile)
# ---------------------------------------------------------------------------
def _flash_attn_kernel(q_ref, k_ref, v_ref, cosq_ref, sinq_ref, cosk_ref,
                       sink_ref, o_ref, m_sc, l_sc, acc_sc, *, scale, tq, tk):
    qi = pl.program_id(1)
    ki = pl.program_id(2)

    @pl.when(ki == 0)
    def _():
        m_sc[...] = jnp.full_like(m_sc, -jnp.inf)
        l_sc[...] = jnp.zeros_like(l_sc)
        acc_sc[...] = jnp.zeros_like(acc_sc)

    # Causal block skip: block contributes only if its first kv position is
    # <= the last query position of this q tile.
    @pl.when(ki * tk <= qi * tq + (tq - 1))
    def _():
        half = q_ref.shape[-1] // 2

        # NeoX RoPE in fp32, lane-dense roll formulation:
        #   rope(x) = x * cos_full + roll(x, half) * sin_signed
        # Softmax scale is folded into q (RoPE is linear).
        q = q_ref[...].astype(jnp.float32) * scale
        k = k_ref[...].astype(jnp.float32)
        qr = q * cosq_ref[...] + pltpu.roll(q, shift=half, axis=1) * sinq_ref[...]
        kr = k * cosk_ref[...] + pltpu.roll(k, shift=half, axis=1) * sink_ref[...]

        # q . k^T without materializing a transpose (contract last dims).
        s = jax.lax.dot_general(
            qr.astype(jnp.bfloat16), kr.astype(jnp.bfloat16),
            (((1,), (1,)), ((), ())),
            preferred_element_type=jnp.float32)               # [tq, tk]

        row = jax.lax.broadcasted_iota(jnp.int32, s.shape, 0) + qi * tq
        col = jax.lax.broadcasted_iota(jnp.int32, s.shape, 1) + ki * tk
        s = jnp.where(col <= row, s, jnp.float32(-1e30))       # causal mask

        m_prev = m_sc[...]
        m_new = jnp.maximum(m_prev, jnp.max(s, axis=-1, keepdims=True))
        alpha = jnp.exp(m_prev - m_new)
        p = jnp.exp(s - m_new)
        l_sc[...] = alpha * l_sc[...] + jnp.sum(p, axis=-1, keepdims=True)
        acc_sc[...] = alpha * acc_sc[...] + jnp.dot(
            p.astype(jnp.bfloat16), v_ref[...],
            preferred_element_type=jnp.float32)
        m_sc[...] = m_new

    @pl.when(ki == pl.num_programs(2) - 1)
    def _():
        o_ref[...] = (acc_sc[...] *
                      pl.reciprocal(l_sc[...], approx=True)).astype(o_ref.dtype)


def flash_attention(qkv, cos_full, sin_signed, *, num_heads, head_dim, scale,
                    tq=128, tk=128):
    """qkv: [S, 3*num_heads*head_dim] bf16 -> attn_out [S, num_heads*head_dim] bf16."""
    S = qkv.shape[0]
    tq, tk = min(tq, S), min(tk, S)
    assert S % tq == 0 and S % tk == 0, "q/kv tiles must divide seq_len"
    assert head_dim % 128 == 0, "head_dim must be lane-dense (multiple of 128)"
    grid = (num_heads, S // tq, S // tk)

    kernel = functools.partial(_flash_attn_kernel, scale=scale, tq=tq, tk=tk)
    return pl.pallas_call(
        kernel,
        out_shape=jax.ShapeDtypeStruct((S, num_heads * head_dim), jnp.bfloat16),
        grid=grid,
        in_specs=[
            # q / k / v head slices read directly out of the [S, 3H] qkv buffer
            pl.BlockSpec((tq, head_dim), lambda h, qi, ki: (qi, h)),
            pl.BlockSpec((tk, head_dim), lambda h, qi, ki: (ki, num_heads + h)),
            pl.BlockSpec((tk, head_dim), lambda h, qi, ki: (ki, 2 * num_heads + h)),
            # RoPE tables (full-width, fp32), indexed by q-tile / kv-tile
            pl.BlockSpec((tq, head_dim), lambda h, qi, ki: (qi, 0)),
            pl.BlockSpec((tq, head_dim), lambda h, qi, ki: (qi, 0)),
            pl.BlockSpec((tk, head_dim), lambda h, qi, ki: (ki, 0)),
            pl.BlockSpec((tk, head_dim), lambda h, qi, ki: (ki, 0)),
        ],
        out_specs=pl.BlockSpec((tq, head_dim), lambda h, qi, ki: (qi, h)),
        scratch_shapes=[
            pltpu.VMEM((tq, 1), jnp.float32),          # running max
            pltpu.VMEM((tq, 1), jnp.float32),          # running sum
            pltpu.VMEM((tq, head_dim), jnp.float32),   # output accumulator
        ],
        compiler_params=pltpu.CompilerParams(
            dimension_semantics=("parallel", "parallel", "arbitrary"),
            vmem_limit_bytes=_VMEM_LIMIT,
        ),
    )(qkv, qkv, qkv, cos_full, sin_signed, cos_full, sin_signed)


# ---------------------------------------------------------------------------
# Wrapper (QWenAttention.forward)
# ---------------------------------------------------------------------------
def qwen_attention_forward(positions, hidden_states, params, *, num_heads,
                           head_dim, rope_theta=10000.0):
    S, H = hidden_states.shape
    scale = head_dim ** -0.5

    # bf16 inputs, fp32 accumulation everywhere.
    x = hidden_states.astype(jnp.bfloat16)
    w_qkv = params["w_qkv"].astype(jnp.bfloat16)
    w_proj = params["w_proj"].astype(jnp.bfloat16)
    b_qkv = params["b_qkv"].astype(jnp.float32).reshape(1, -1)

    # ---- c_attn: tiled QKV projection ----
    qkv = tiled_matmul(x, w_qkv, b_qkv, out_dtype=jnp.bfloat16)   # [S, 3H] bf16

    # ---- rotary tables (NeoX, rotary_dim == head_dim), lane-dense form ----
    inv_freq = 1.0 / (rope_theta ** (
        jnp.arange(0, head_dim, 2, dtype=jnp.float32) / head_dim))
    freqs = positions.astype(jnp.float32)[:, None] * inv_freq[None, :]  # [S, hd/2]
    cos = jnp.cos(freqs)
    sin = jnp.sin(freqs)
    cos_full = jnp.concatenate([cos, cos], axis=-1)       # [S, head_dim]
    sin_signed = jnp.concatenate([-sin, sin], axis=-1)    # [S, head_dim]

    # ---- attention: flash-style tiled online softmax, RoPE fused ----
    attn_out = flash_attention(qkv, cos_full, sin_signed,
                               num_heads=num_heads, head_dim=head_dim,
                               scale=scale)                # [S, H] bf16

    # ---- c_proj: tiled output projection (no bias) ----
    out = tiled_matmul(attn_out, w_proj, None, out_dtype=jnp.float32)
    return out


# ---------------------------------------------------------------------------
# Pure-JAX reference for verification (same bf16-cast inputs, fp32 math)
# ---------------------------------------------------------------------------
def reference_forward(positions, x, params, *, num_heads, head_dim,
                      rope_theta=10000.0):
    x = x.astype(jnp.bfloat16).astype(jnp.float32)
    w_qkv = params["w_qkv"].astype(jnp.bfloat16).astype(jnp.float32)
    w_proj = params["w_proj"].astype(jnp.bfloat16).astype(jnp.float32)
    b_qkv = params["b_qkv"].astype(jnp.float32).reshape(1, -1)

    S, H = x.shape
    qkv = x @ w_qkv + b_qkv
    q, k, v = jnp.split(qkv, 3, axis=-1)
    half = head_dim // 2
    inv_freq = 1.0 / (rope_theta ** (
        jnp.arange(0, head_dim, 2, dtype=jnp.float32) / head_dim))
    freqs = positions.astype(jnp.float32)[:, None] * inv_freq[None, :]
    cos, sin = jnp.cos(freqs)[:, None, :], jnp.sin(freqs)[:, None, :]

    def rope(t):
        t = t.reshape(S, num_heads, head_dim)
        t1, t2 = t[..., :half], t[..., half:]
        return jnp.concatenate([t1 * cos - t2 * sin, t2 * cos + t1 * sin], axis=-1)

    qr, kr = rope(q), rope(k)
    v3 = v.reshape(S, num_heads, head_dim)
    s = jnp.einsum("qhd,khd->hqk", qr, kr) * (head_dim ** -0.5)
    mask = jnp.tril(jnp.ones((S, S), bool))
    s = jnp.where(mask[None], s, -jnp.inf)
    p = jax.nn.softmax(s, axis=-1)
    o = jnp.einsum("hqk,khd->qhd", p, v3).reshape(S, num_heads * head_dim)
    return o @ w_proj


# ---------------------------------------------------------------------------
if __name__ == "__main__":
    # Small but tile-friendly shapes: head_dim = 128 (lane-dense), seq a
    # multiple of the 128-wide flash tiles so the tiled grids are exercised.
    num_heads = 2
    head_dim = 128
    hidden_size = num_heads * head_dim      # 256
    seq_len = 256
    rope_theta = 10000.0

    key = jax.random.PRNGKey(0)
    k1, k2, k3, k4 = jax.random.split(key, 4)

    params = {
        "w_qkv": 0.05 * jax.random.normal(k1, (hidden_size, 3 * hidden_size), jnp.float32),
        "b_qkv": 0.01 * jax.random.normal(k2, (1, 3 * hidden_size), jnp.float32),
        "w_proj": 0.05 * jax.random.normal(k3, (hidden_size, hidden_size), jnp.float32),
    }
    hidden_states = jax.random.normal(k4, (seq_len, hidden_size), jnp.float32)
    positions = jnp.arange(seq_len, dtype=jnp.int32)

    out = qwen_attention_forward(
        positions, hidden_states, params,
        num_heads=num_heads, head_dim=head_dim, rope_theta=rope_theta)
    out = jax.block_until_ready(out)

    ref = reference_forward(
        positions, hidden_states, params,
        num_heads=num_heads, head_dim=head_dim, rope_theta=rope_theta)

    assert out.shape == (seq_len, hidden_size)
    # bf16 inputs / intermediates with fp32 accumulation -> loosened tolerance.
    assert jnp.allclose(out, ref, atol=3e-2, rtol=3e-2), "mismatch vs reference"
    print("KERNEL_OK")
</pallas_src>

<mosaic_0001>
module attributes {stable_mosaic.version = 11 : i64} {
  func.func @_gemm_bias_kernel(%arg0: i32, %arg1: i32, %arg2: i32, %arg3: memref<256x256xbf16, #tpu.memory_space<vmem>>, %arg4: memref<256x256xbf16, #tpu.memory_space<vmem>>, %arg5: memref<1x256xf32, #tpu.memory_space<vmem>>, %arg6: memref<256x256xbf16, #tpu.memory_space<vmem>>, %arg7: memref<256x256xf32, #tpu.memory_space<vmem>>) attributes {dimension_semantics = [#tpu.dimension_semantics<parallel>, #tpu.dimension_semantics<parallel>, #tpu.dimension_semantics<arbitrary>], iteration_bounds = array<i64: 1, 3, 1>, scalar_prefetch = 0 : i64, scratch_operands = 1 : i64, tpu.core_type = #tpu.core_type<tc>, window_params = [{transform_indices = @transform_0, window_bounds = array<i64: 256, 256>}, {transform_indices = @transform_1, window_bounds = array<i64: 256, 256>}, {transform_indices = @transform_2, window_bounds = array<i64: 1, 256>}, {transform_indices = @transform_3, window_bounds = array<i64: 256, 256>}]} {
    %c0_i32 = arith.constant 0 : i32
    %0 = arith.cmpi eq, %arg2, %c0_i32 : i32
    %1 = arith.extui %0 : i1 to i32
    %c0_i32_0 = arith.constant 0 : i32
    %2 = arith.cmpi ne, %1, %c0_i32_0 : i32
    scf.if %2 {
      %cst_10 = arith.constant 0.000000e+00 : f32
      %12 = vector.broadcast %cst_10 : f32 to vector<256x256xf32>
      %c0_11 = arith.constant 0 : index
      %c0_12 = arith.constant 0 : index
      %13 = vector.load %arg7[%c0_11, %c0_12] : memref<256x256xf32, #tpu.memory_space<vmem>>, vector<256x256xf32>
      tpu.vector_store %arg7[%c0_11, %c0_12], %12 {strides = array<i32>} : memref<256x256xf32, #tpu.memory_space<vmem>>, vector<256x256xf32>,
    } else {
    }
    %c0 = arith.constant 0 : index
    %c0_1 = arith.constant 0 : index
    %3 = vector.load %arg7[%c0, %c0_1] : memref<256x256xf32, #tpu.memory_space<vmem>>, vector<256x256xf32>
    %c0_2 = arith.constant 0 : index
    %c0_3 = arith.constant 0 : index
    %4 = vector.load %arg3[%c0_2, %c0_3] : memref<256x256xbf16, #tpu.memory_space<vmem>>, vector<256x256xbf16>
    %c0_4 = arith.constant 0 : index
    %c0_5 = arith.constant 0 : index
    %5 = vector.load %arg4[%c0_4, %c0_5] : memref<256x256xbf16, #tpu.memory_space<vmem>>, vector<256x256xbf16>
    %cst = arith.constant dense<0.000000e+00> : vector<256x256xf32>
    %6 = tpu.matmul %4, %5, %cst {dimension_numbers = #tpu.dot_dimension_numbers<[1], [0], [0], [1], [0, 0, 1, 1], [], []>} : vector<256x256xbf16>, vector<256x256xbf16>, vector<256x256xf32> -> vector<256x256xf32>
    %7 = arith.addf %3, %6 : vector<256x256xf32>
    %c0_6 = arith.constant 0 : index
    %c0_7 = arith.constant 0 : index
    %8 = vector.load %arg7[%c0_6, %c0_7] : memref<256x256xf32, #tpu.memory_space<vmem>>, vector<256x256xf32>
    tpu.vector_store %arg7[%c0_6, %c0_7], %7 {strides = array<i32>} : memref<256x256xf32, #tpu.memory_space<vmem>>, vector<256x256xf32>,
    %c0_i32_8 = arith.constant 0 : i32
    %9 = arith.cmpi eq, %arg2, %c0_i32_8 : i32
    %10 = arith.extui %9 : i1 to i32
    %c0_i32_9 = arith.constant 0 : i32
    %11 = arith.cmpi ne, %10, %c0_i32_9 : i32
    scf.if %11 {
      %c0_10 = arith.constant 0 : index
      %c0_11 = arith.constant 0 : index
      %12 = vector.load %arg7[%c0_10, %c0_11] : memref<256x256xf32, #tpu.memory_space<vmem>>, vector<256x256xf32>
      %c0_12 = arith.constant 0 : index
      %c0_13 = arith.constant 0 : index
      %13 = vector.load %arg5[%c0_12, %c0_13] : memref<1x256xf32, #tpu.memory_space<vmem>>, vector<1x256xf32>
      %14 = vector.broadcast %13 : vector<1x256xf32> to vector<256x256xf32>
      %15 = arith.addf %12, %14 : vector<256x256xf32>
      %16 = arith.truncf %15 : vector<256x256xf32> to vector<256x256xbf16>
      %c0_14 = arith.constant 0 : index
      %c0_15 = arith.constant 0 : index
      %17 = vector.load %arg6[%c0_14, %c0_15] : memref<256x256xbf16, #tpu.memory_space<vmem>>, vector<256x256xbf16>
      tpu.vector_store %arg6[%c0_14, %c0_15], %16 {strides = array<i32>} : memref<256x256xbf16, #tpu.memory_space<vmem>>, vector<256x256xbf16>,
    } else {
    }
    return
  }
  func.func @transform_0(%arg0: i32, %arg1: i32, %arg2: i32) -> (i32, i32) {
    %c0_i32 = arith.constant 0 : i32
    return %arg0, %arg2 : i32, i32
  }
  func.func @transform_1(%arg0: i32, %arg1: i32, %arg2: i32) -> (i32, i32) {
    %c0_i32 = arith.constant 0 : i32
    return %arg2, %arg1 : i32, i32
  }
  func.func @transform_2(%arg0: i32, %arg1: i32, %arg2: i32) -> (i32, i32) {
    %c0_i32 = arith.constant 0 : i32
    %c0_i32_0 = arith.constant 0 : i32
    return %c0_i32, %arg1 : i32, i32
  }
  func.func @transform_3(%arg0: i32, %arg1: i32, %arg2: i32) -> (i32, i32) {
    %c0_i32 = arith.constant 0 : i32
    return %arg0, %arg1 : i32, i32
  }
}

</mosaic_0001>

<llo_original>
// kernel: tpu_custom_call.1
$region0: #{tpu_custom_call.1}
  #allocation0 [shape = 'u32[]', space=smem, size = 0x4, offset = 0x4, fixed_abs, tag = 'smem constant byte address 0x4 - core index']
  #allocation1 [shape = 'u32[72,128]{1,0:T(1,128)}', space=vmem, size = 0x9000, scoped, tag = 'internal scratch']
  #allocation2 [shape = 'f32[256,256]{1,0:T(8,128)}', space=vmem, size = 0x40000, scoped, tag = 'scratch operand']
  %s0 = inlined_call_operand.hbm [shape: bf16[256,256], index: 0, kind: input, shape index: {}]
  %s1 = inlined_call_operand.hbm [shape: bf16[256,768], index: 1, kind: input, shape index: {}]
  %s2 = inlined_call_operand.hbm [shape: f32[1,768], index: 2, kind: input, shape index: {}]
  %s3 = inlined_call_operand.hbm [shape: bf16[256,768], index: 3, kind: output, shape index: {}]
  %s4 = sld [smem:[#allocation0]]
  $region65: #{tpu_custom_call.1} parent=0
    _
  %s6 = ssub.s32 1, %s4
  %s7 = scalar_select 0, %s6, %s4
  $region1: #{tpu_custom_call.1} parent=0
    #allocation3 [shape = 'u8[131072]{0}', space=vmem, size = 0x20000, scoped, tag = 'input window, operand 0, single buffered']
    #allocation4 [shape = 's32[2]{0}', space=sflag, size = 0x8, scoped, tag = 'scoped memory for tpu_custom_call.1']
    #allocation5 [shape = 's32[2]{0}', space=sflag, size = 0x8, scoped, tag = 'scoped memory for tpu_custom_call.1']
    #allocation6 [shape = 'u8[262144]{0}', space=vmem, size = 0x40000, scoped, tag = 'input window, operand 1']
    #allocation7 [shape = 's32[2]{0}', space=sflag, size = 0x8, scoped, tag = 'scoped memory for tpu_custom_call.1']
    #allocation8 [shape = 'u8[2048]{0}', space=vmem, size = 0x800, scoped, tag = 'input window, operand 2']
    #allocation9 [shape = 'u8[262144]{0}', space=vmem, size = 0x40000, scoped, tag = 'output window, operand 0']
    %8 = vsyncpa [#allocation4], 0
    %9 = vsyncpa [#allocation7], 0
    %s10 = scalar_lea.sflag [#allocation7], 1
    %11 = vsyncpa %s10, 0
    %12 = vsyncpa [#allocation5], 0
    %s13 = scalar_lea.sflag [#allocation5], 1
    %14 = vsyncpa %s13, 0
    loop: start=0, step=1, limit=5
    $region2: #{tpu_custom_call.1} parent=1 // loop_pre_header
      _
    $region3: #{tpu_custom_call.1} parent=1 // loop_header
      %s16 = sphi 0, %s20
      %p17 = scmp.ge.s32.totalorder %s16, 5
      %s23 = sphi 0, %s42
      %s24 = sphi 0, %s38
      %s25 = sphi 0, %s34
      %s26 = sphi 0, %s23
      %s27 = sphi 0, %s24
      %s28 = sphi 0, %s25
      %s29 = sphi 0, %s26
      %s30 = sphi 0, %s27
      %s31 = sphi 0, %s28
      %s47 = sphi 0, %s49
      %s50 = sphi 0, %s47
      %s51 = sphi 0, %s50
      %s67 = sphi 0, %s51
      %s75 = sphi 0, %s77
      %s78 = sphi 0, %s75
      %s79 = sphi 0, %s78
      %s95 = sphi 0, %s79
      %s101 = sphi 0, %s103
      %s104 = sphi 0, %s101
      %s105 = sphi 0, %s104
      %s121 = sphi 0, %s105
      %s129 = sphi 0, %s131
      %s132 = sphi 0, %s129
      %s133 = sphi 0, %s132
      %s149 = sphi 0, %s133
    $region4: #{tpu_custom_call.1} parent=1 // loop_header_branch
      %19 = sbr.rel (%p17) target = $region8
    $region5: #{tpu_custom_call.1} parent=1 // loop_body
      %s21 = ssub.s32 %s16, 1
      %s22 = ssub.s32 %s16, 2
      %s32 = sadd.s32 1, %s25
      %p33 = scmp.ge.s32.totalorder %s32, 1
      %s34 = scalar_select %p33, 0, %s32
      %s35 = sadd.s32 1, %s24
      %s36 = scalar_select %p33, %s35, %s24
      %p37 = scmp.ge.s32.totalorder %s36, 3
      %s38 = scalar_select %p37, 0, %s36
      %s39 = sadd.s32 1, %s23
      %s40 = scalar_select %p37, %s39, %s23
      %p41 = scmp.ge.s32.totalorder %s40, 1
      %s42 = scalar_select %p41, 0, %s40
      %s43 = ssub.s32 %s23, %s42
      %s44 = ssub.s32 %s25, %s34
      %s45 = sor.u32 %s43, %s44
      %p46 = scmp.eq.s32.totalorder %s45, 0
      %s48 = sadd.s32 %s47, 1
      %s49 = scalar_select %p46, %s47, %s48
      %p52 = pneg %p46
      %p53 = scmp.eq.s32.totalorder %s16, 2
      %p54 = por %p52, %p53
      %p55 = scmp.ne.s32.totalorder %s47, %s50
      %p56 = scmp.eq.s32.totalorder %s16, 0
      %p57 = por %p55, %p56
      %p58 = scmp.ne.s32.totalorder %s47, %s50
      %p59 = scmp.eq.s32.totalorder %s21, 2
      %p60 = por %p58, %p59
      %p61 = scmp.ne.s32.totalorder %s50, %s51
      %p62 = scmp.eq.s32.totalorder %s21, 0
      %p63 = por %p61, %p62
      %p64 = scmp.ne.s32.totalorder %s50, %s51
      %p65 = scmp.eq.s32.totalorder %s22, 2
      %p66 = por %p64, %p65
      %p68 = scmp.ne.s32.totalorder %s51, %s67
      %p69 = scmp.eq.s32.totalorder %s22, 0
      %p70 = por %p68, %p69
      %s71 = ssub.s32 %s25, %s34
      %s72 = ssub.s32 %s24, %s38
      %s73 = sor.u32 %s71, %s72
      %p74 = scmp.eq.s32.totalorder %s73, 0
      %s76 = sadd.s32 %s75, 1
      %s77 = scalar_select %p74, %s75, %s76
      %p80 = pneg %p74
      %p81 = scmp.eq.s32.totalorder %s16, 2
      %p82 = por %p80, %p81
      %p83 = scmp.ne.s32.totalorder %s75, %s78
      %p84 = scmp.eq.s32.totalorder %s16, 0
      %p85 = por %p83, %p84
      %p86 = scmp.ne.s32.totalorder %s75, %s78
      %p87 = scmp.eq.s32.totalorder %s21, 2
      %p88 = por %p86, %p87
      %p89 = scmp.ne.s32.totalorder %s78, %s79
      %p90 = scmp.eq.s32.totalorder %s21, 0
      %p91 = por %p89, %p90
      %p92 = scmp.ne.s32.totalorder %s78, %s79
      %p93 = scmp.eq.s32.totalorder %s22, 2
      %p94 = por %p92, %p93
      %p96 = scmp.ne.s32.totalorder %s79, %s95
      %p97 = scmp.eq.s32.totalorder %s22, 0
      %p98 = por %p96, %p97
      %s99 = ssub.s32 %s24, %s38
      %p100 = scmp.eq.s32.totalorder %s99, 0
      %s102 = sadd.s32 %s101, 1
      %s103 = scalar_select %p100, %s101, %s102
      %p106 = pneg %p100
      %p107 = scmp.eq.s32.totalorder %s16, 2
      %p108 = por %p106, %p107
      %p109 = scmp.ne.s32.totalorder %s101, %s104
      %p110 = scmp.eq.s32.totalorder %s16, 0
      %p111 = por %p109, %p110
      %p112 = scmp.ne.s32.totalorder %s101, %s104
      %p113 = scmp.eq.s32.totalorder %s21, 2
      %p114 = por %p112, %p113
      %p115 = scmp.ne.s32.totalorder %s104, %s105
      %p116 = scmp.eq.s32.totalorder %s21, 0
      %p117 = por %p115, %p116
      %p118 = scmp.ne.s32.totalorder %s104, %s105
      %p119 = scmp.eq.s32.totalorder %s22, 2
      %p120 = por %p118, %p119
      %p122 = scmp.ne.s32.totalorder %s105, %s121
      %p123 = scmp.eq.s32.totalorder %s22, 0
      %p124 = por %p122, %p123
      %s125 = ssub.s32 %s23, %s42
      %s126 = ssub.s32 %s24, %s38
      %s127 = sor.u32 %s125, %s126
      %p128 = scmp.eq.s32.totalorder %s127, 0
      %s130 = sadd.s32 %s129, 1
      %s131 = scalar_select %p128, %s129, %s130
      %p134 = pneg %p128
      %p135 = scmp.eq.s32.totalorder %s16, 2
      %p136 = por %p134, %p135
      %p137 = scmp.ne.s32.totalorder %s129, %s132
      %p138 = scmp.eq.s32.totalorder %s16, 0
      %p139 = por %p137, %p138
      %p140 = scmp.ne.s32.totalorder %s129, %s132
      %p141 = scmp.eq.s32.totalorder %s21, 2
      %p142 = por %p140, %p141
      %p143 = scmp.ne.s32.totalorder %s132, %s133
      %p144 = scmp.eq.s32.totalorder %s21, 0
      %p145 = por %p143, %p144
      %p146 = scmp.ne.s32.totalorder %s132, %s133
      %p147 = scmp.eq.s32.totalorder %s22, 2
      %p148 = por %p146, %p147
      %p150 = scmp.ne.s32.totalorder %s133, %s149
      %p151 = scmp.eq.s32.totalorder %s22, 0
      %p152 = por %p150, %p151
      %p153 = scmp.le.s32.totalorder 1, %s16
      %p154 = scmp.lt.s32.totalorder %s16, 4
      %p155 = pnand %p153, %p154
      %p156 = pneg %p155
      // Predicated region
      $region9: #{tpu_custom_call.1} parent=5 // pred_check
        _
      $region10: #{tpu_custom_call.1} parent=5 // pred_check_branch
        %158 = sbr.rel (%p155) target = $region12
      $region11: #{tpu_custom_call.1} parent=5 // pred_region
        %s159 = ssub.s32 %s16, 1
        // Predicated region
        $region13: #{tpu_custom_call.1} parent=11 // pred_check
          %p160 = pneg %p63
        $region14: #{tpu_custom_call.1} parent=11 // pred_check_branch
          %162 = sbr.rel (%p160) target = $region16
        $region15: #{tpu_custom_call.1} parent=11 // pred_region
          %s163 = smul.u32 32, %s26
          %s164 = smul.u32 2, %s28
          %166 = vsyncadd [#allocation4], 0
          %s167 = smul.addr %s163, 2
          %s168 = sadd.s32 %s164, %s167
          %s169 = smul.addr %s168, 4
          %s170 = scalar_lea.hbm %s0, %s169
          %s171 = sshll.u32 %s170, 4
          %s172 = int_to_ptr.hbm [resolvable:$true] %s171
          %s173 = sshll.u32 [#allocation3], 4
          %s174 = int_to_ptr.vmem [resolvable:$true] %s173
          %179 = dma.hbm_to_vmem [thread:$0]  %s172, 4096, %s174, [#allocation4], 128, 128, 8
        $region16: #{tpu_custom_call.1} parent=11 // pred_fallthru
          _
      $region12: #{tpu_custom_call.1} parent=5 // pred_fallthru
        _
      %p180 = scmp.lt.s32.totalorder %s16, 3
      // Predicated region
      $region17: #{tpu_custom_call.1} parent=5 // pred_check
        %p181 = pneg %p180
      $region18: #{tpu_custom_call.1} parent=5 // pred_check_branch
        %183 = sbr.rel (%p181) target = $region20
      $region19: #{tpu_custom_call.1} parent=5 // pred_region
        // Predicated region
        $region21: #{tpu_custom_call.1} parent=19 // pred_check
          %p184 = pneg %p85
        $region22: #{tpu_custom_call.1} parent=19 // pred_check_branch
          %186 = sbr.rel (%p184) target = $region24
        $region23: #{tpu_custom_call.1} parent=19 // pred_region
          %s187 = sand.u32 %s16, 1
          %s188 = scalar_lea.sflag [#allocation7], %s187
          %s189 = sand.u32 %s75, 1
          %s190 = smul.addr %s189, 256
          %s191 = scalar_lea.vmem [#allocation6], %s190
          %s192 = smul.u32 32, %s25
          %s193 = smul.u32 2, %s24
          %195 = vsyncadd %s188, 0
          %s196 = smul.addr %s192, 6
          %s197 = sadd.s32 %s193, %s196
          %s198 = smul.addr %s197, 4
          %s199 = scalar_lea.hbm %s1, %s198
          %s200 = sshll.u32 %s199, 4
          %s201 = int_to_ptr.hbm [resolvable:$true] %s200
          %s202 = sshll.u32 %s191, 4
          %s203 = int_to_ptr.vmem [resolvable:$true] %s202
          %208 = dma.hbm_to_vmem [thread:$0]  %s201, 4096, %s203, %s188, 384, 128, 8
        $region24: #{tpu_custom_call.1} parent=19 // pred_fallthru
          _
        // Predicated region
        $region25: #{tpu_custom_call.1} parent=19 // pred_check
          %p209 = pneg %p111
        $region26: #{tpu_custom_call.1} parent=19 // pred_check_branch
          %211 = sbr.rel (%p209) target = $region28
        $region27: #{tpu_custom_call.1} parent=19 // pred_region
          %s212 = sand.u32 %s16, 1
          %s213 = scalar_lea.sflag [#allocation7], %s212
          %s214 = sand.u32 %s101, 1
          %s215 = smul.addr %s214, 2
          %s216 = scalar_lea.vmem [#allocation8], %s215
          %s217 = smul.u32 2, %s24
          %219 = vsyncadd %s213, 0
          %s220 = scalar_lea.hbm %s2, %s217
          %s222 = sshll.u32 %s220, 4
          %s223 = int_to_ptr.hbm [resolvable:$true] %s222
          %s224 = sshll.u32 %s216, 4
          %s225 = int_to_ptr.vmem [resolvable:$true] %s224
          %227 = dma.hbm_to_vmem [thread:$0]  %s223, 32, %s225, %s213
        $region28: #{tpu_custom_call.1} parent=19 // pred_fallthru
          _
      $region20: #{tpu_custom_call.1} parent=5 // pred_fallthru
        _
      %p228 = scmp.le.s32.totalorder 1, %s16
      %p229 = scmp.lt.s32.totalorder %s16, 4
      %p230 = pnand %p228, %p229
      %p231 = pneg %p230
      // Predicated region
      $region29: #{tpu_custom_call.1} parent=5 // pred_check
        _
      $region30: #{tpu_custom_call.1} parent=5 // pred_check_branch
        %233 = sbr.rel (%p230) target = $region32
      $region31: #{tpu_custom_call.1} parent=5 // pred_region
        %s234 = ssub.s32 %s16, 1
        // Predicated region
        $region33: #{tpu_custom_call.1} parent=31 // pred_check
          %p235 = pneg %p63
        $region34: #{tpu_custom_call.1} parent=31 // pred_check_branch
          %237 = sbr.rel (%p235) target = $region36
        $region35: #{tpu_custom_call.1} parent=31 // pred_region
          %239 = dma.done [#allocation4], 4096
        $region36: #{tpu_custom_call.1} parent=31 // pred_fallthru
          _
        %s240 = sand.u32 %s21, 1
        %s241 = scalar_lea.sflag [#allocation7], %s240
        %s242 = sand.u32 %s78, 1
        %s243 = smul.addr %s242, 256
        %s244 = scalar_lea.vmem [#allocation6], %s243
        // Predicated region
        $region37: #{tpu_custom_call.1} parent=31 // pred_check
          %p245 = pneg %p91
        $region38: #{tpu_custom_call.1} parent=31 // pred_check_branch
          %247 = sbr.rel (%p245) target = $region40
        $region39: #{tpu_custom_call.1} parent=31 // pred_region
          %249 = dma.done %s241, 4096
        $region40: #{tpu_custom_call.1} parent=31 // pred_fallthru
          _
        %s250 = sand.u32 %s21, 1
        %s251 = scalar_lea.sflag [#allocation7], %s250
        %s252 = sand.u32 %s104, 1
        %s253 = smul.addr %s252, 2
        %s254 = scalar_lea.vmem [#allocation8], %s253
        // Predicated region
        $region41: #{tpu_custom_call.1} parent=31 // pred_check
          %p255 = pneg %p117
        $region42: #{tpu_custom_call.1} parent=31 // pred_check_branch
          %257 = sbr.rel (%p255) target = $region44
        $region43: #{tpu_custom_call.1} parent=31 // pred_region
          %259 = dma.done %s251, 32
        $region44: #{tpu_custom_call.1} parent=31 // pred_fallthru
          _
        %p260 = pneg %p63
        %p261 = pneg %p60
        %s262 = sand.u32 %s21, 1
        %s263 = scalar_lea.sflag [#allocation7], %s262
        %s264 = sand.u32 %s78, 1
        %s265 = smul.addr %s264, 256
        %s266 = scalar_lea.vmem [#allocation6], %s265
        %p267 = pneg %p91
        %p268 = pneg %p88
        %s269 = sand.u32 %s21, 1
        %s270 = scalar_lea.sflag [#allocation7], %s269
        %s271 = sand.u32 %s104, 1
        %s272 = smul.addr %s271, 2
        %s273 = scalar_lea.vmem [#allocation8], %s272
        %p274 = pneg %p117
        %p275 = pneg %p114
        %p276 = pneg %p145
        %p277 = pneg %p142
        %s278 = sand.u32 %s132, 1
        %s279 = scalar_lea.sflag [#allocation5], %s278
        %s280 = sand.u32 %s132, 1
        %s281 = smul.addr %s280, 256
        %s282 = scalar_lea.vmem [#allocation9], %s281
        %s283 = smul.u32 32, %s26
        %s284 = smul.u32 2, %s28
        %s285 = smul.u32 32, %s28
        %s286 = smul.u32 2, %s27
        %s287 = smul.u32 2, %s27
        %s288 = smul.u32 32, %s26
        %s289 = smul.u32 2, %s27
        %p290 = scmp.eq.s32.totalorder %s28, 0
        // Predicated region
        $region45: #{tpu_custom_call.1} parent=31 // pred_check
          %p291 = pneg %p290
        $region46: #{tpu_custom_call.1} parent=31 // pred_check_branch
          %293 = sbr.rel (%p291) target = $region48
        $region47: #{tpu_custom_call.1} parent=31 // pred_region
          %294 = vst [vmem:[#allocation2] sm:$0xff] 0.0
          %295 = vst [vmem:[#allocation2 + $0x8] sm:$0xff] 0.0
          %296 = vst [vmem:[#allocation2 + $0x10] sm:$0xff] 0.0
          %297 = vst [vmem:[#allocation2 + $0x18] sm:$0xff] 0.0
          %298 = vst [vmem:[#allocation2 + $0x20] sm:$0xff] 0.0
          %299 = vst [vmem:[#allocation2 + $0x28] sm:$0xff] 0.0
          %300 = vst [vmem:[#allocation2 + $0x30] sm:$0xff] 0.0
          %301 = vst [vmem:[#allocation2 + $0x38] sm:$0xff] 0.0
          %302 = vst [vmem:[#allocation2 + $0x40] sm:$0xff] 0.0
          %303 = vst [vmem:[#allocation2 + $0x48] sm:$0xff] 0.0
          %304 = vst [vmem:[#allocation2 + $0x50] sm:$0xff] 0.0
          %305 = vst [vmem:[#allocation2 + $0x58] sm:$0xff] 0.0
          %306 = vst [vmem:[#allocation2 + $0x60] sm:$0xff] 0.0
          %307 = vst [vmem:[#allocation2 + $0x68] sm:$0xff] 0.0
          %308 = vst [vmem:[#allocation2 + $0x70] sm:$0xff] 0.0
          %309 = vst [vmem:[#allocation2 + $0x78] sm:$0xff] 0.0
          %310 = vst [vmem:[#allocation2 + $0x80] sm:$0xff] 0.0
          %311 = vst [vmem:[#allocation2 + $0x88] sm:$0xff] 0.0
          %312 = vst [vmem:[#allocation2 + $0x90] sm:$0xff] 0.0
          %313 = vst [vmem:[#allocation2 + $0x98] sm:$0xff] 0.0
          %314 = vst [vmem:[#allocation2 + $0xa0] sm:$0xff] 0.0
          %315 = vst [vmem:[#allocation2 + $0xa8] sm:$0xff] 0.0
          %316 = vst [vmem:[#allocation2 + $0xb0] sm:$0xff] 0.0
          %317 = vst [vmem:[#allocation2 + $0xb8] sm:$0xff] 0.0
          %318 = vst [vmem:[#allocation2 + $0xc0] sm:$0xff] 0.0
          %319 = vst [vmem:[#allocation2 + $0xc8] sm:$0xff] 0.0
          %320 = vst [vmem:[#allocation2 + $0xd0] sm:$0xff] 0.0
          %321 = vst [vmem:[#allocation2 + $0xd8] sm:$0xff] 0.0
          %322 = vst [vmem:[#allocation2 + $0xe0] sm:$0xff] 0.0
          %323 = vst [vmem:[#allocation2 + $0xe8] sm:$0xff] 0.0
          %324 = vst [vmem:[#allocation2 + $0xf0] sm:$0xff] 0.0
          %325 = vst [vmem:[#allocation2 + $0xf8] sm:$0xff] 0.0
          %326 = vst [vmem:[#allocation2 + $0x100] sm:$0xff] 0.0
          %327 = vst [vmem:[#allocation2 + $0x108] sm:$0xff] 0.0
          %328 = vst [vmem:[#allocation2 + $0x110] sm:$0xff] 0.0
          %329 = vst [vmem:[#allocation2 + $0x118] sm:$0xff] 0.0
          %330 = vst [vmem:[#allocation2 + $0x120] sm:$0xff] 0.0
          %331 = vst [vmem:[#allocation2 + $0x128] sm:$0xff] 0.0
          %332 = vst [vmem:[#allocation2 + $0x130] sm:$0xff] 0.0
          %333 = vst [vmem:[#allocation2 + $0x138] sm:$0xff] 0.0
          %334 = vst [vmem:[#allocation2 + $0x140] sm:$0xff] 0.0
          %335 = vst [vmem:[#allocation2 + $0x148] sm:$0xff] 0.0
          %336 = vst [vmem:[#allocation2 + $0x150] sm:$0xff] 0.0
          %337 = vst [vmem:[#allocation2 + $0x158] sm:$0xff] 0.0
          %338 = vst [vmem:[#allocation2 + $0x160] sm:$0xff] 0.0
          %339 = vst [vmem:[#allocation2 + $0x168] sm:$0xff] 0.0
          %340 = vst [vmem:[#allocation2 + $0x170] sm:$0xff] 0.0
          %341 = vst [vmem:[#allocation2 + $0x178] sm:$0xff] 0.0
          %342 = vst [vmem:[#allocation2 + $0x180] sm:$0xff] 0.0
          %343 = vst [vmem:[#allocation2 + $0x188] sm:$0xff] 0.0
          %344 = vst [vmem:[#allocation2 + $0x190] sm:$0xff] 0.0
          %345 = vst [vmem:[#allocation2 + $0x198] sm:$0xff] 0.0
          %346 = vst [vmem:[#allocation2 + $0x1a0] sm:$0xff] 0.0
          %347 = vst [vmem:[#allocation2 + $0x1a8] sm:$0xff] 0.0
          %348 = vst [vmem:[#allocation2 + $0x1b0] sm:$0xff] 0.0
          %349 = vst [vmem:[#allocation2 + $0x1b8] sm:$0xff] 0.0
          %350 = vst [vmem:[#allocation2 + $0x1c0] sm:$0xff] 0.0
          %351 = vst [vmem:[#allocation2 + $0x1c8] sm:$0xff] 0.0
          %352 = vst [vmem:[#allocation2 + $0x1d0] sm:$0xff] 0.0
          %353 = vst [vmem:[#allocation2 + $0x1d8] sm:$0xff] 0.0
          %354 = vst [vmem:[#allocation2 + $0x1e0] sm:$0xff] 0.0
          %355 = vst [vmem:[#allocation2 + $0x1e8] sm:$0xff] 0.0
          %356 = vst [vmem:[#allocation2 + $0x1f0] sm:$0xff] 0.0
          %357 = vst [vmem:[#allocation2 + $0x1f8] sm:$0xff] 0.0
        $region48: #{tpu_custom_call.1} parent=31 // pred_fallthru
          _
        %v358 = vld [vmem:[#allocation2] sm:$0xff]
        %v359 = vld [vmem:[#allocation2 + $0x8] sm:$0xff]
        %v360 = vld [vmem:[#allocation2 + $0x10] sm:$0xff]
        %v361 = vld [vmem:[#allocation2 + $0x18] sm:$0xff]
        %v362 = vld [vmem:[#allocation2 + $0x20] sm:$0xff]
        %v363 = vld [vmem:[#allocation2 + $0x28] sm:$0xff]
        %v364 = vld [vmem:[#allocation2 + $0x30] sm:$0xff]
        %v365 = vld [vmem:[#allocation2 + $0x38] sm:$0xff]
        %v366 = vld [vmem:[#allocation2 + $0x40] sm:$0xff]
        %v367 = vld [vmem:[#allocation2 + $0x48] sm:$0xff]
        %v368 = vld [vmem:[#allocation2 + $0x50] sm:$0xff]
        %v369 = vld [vmem:[#allocation2 + $0x58] sm:$0xff]
        %v370 = vld [vmem:[#allocation2 + $0x60] sm:$0xff]
        %v371 = vld [vmem:[#allocation2 + $0x68] sm:$0xff]
        %v372 = vld [vmem:[#allocation2 + $0x70] sm:$0xff]
        %v373 = vld [vmem:[#allocation2 + $0x78] sm:$0xff]
        %v374 = vld [vmem:[#allocation2 + $0x80] sm:$0xff]
        %v375 = vld [vmem:[#allocation2 + $0x88] sm:$0xff]
        %v376 = vld [vmem:[#allocation2 + $0x90] sm:$0xff]
        %v377 = vld [vmem:[#allocation2 + $0x98] sm:$0xff]
        %v378 = vld [vmem:[#allocation2 + $0xa0] sm:$0xff]
        %v379 = vld [vmem:[#allocation2 + $0xa8] sm:$0xff]
        %v380 = vld [vmem:[#allocation2 + $0xb0] sm:$0xff]
        %v381 = vld [vmem:[#allocation2 + $0xb8] sm:$0xff]
        %v382 = vld [vmem:[#allocation2 + $0xc0] sm:$0xff]
        %v383 = vld [vmem:[#allocation2 + $0xc8] sm:$0xff]
        %v384 = vld [vmem:[#allocation2 + $0xd0] sm:$0xff]
        %v385 = vld [vmem:[#allocation2 + $0xd8] sm:$0xff]
        %v386 = vld [vmem:[#allocation2 + $0xe0] sm:$0xff]
        %v387 = vld [vmem:[#allocation2 + $0xe8] sm:$0xff]
        %v388 = vld [vmem:[#allocation2 + $0xf0] sm:$0xff]
        %v389 = vld [vmem:[#allocation2 + $0xf8] sm:$0xff]
        %v390 = vld [vmem:[#allocation2 + $0x100] sm:$0xff]
        %v391 = vld [vmem:[#allocation2 + $0x108] sm:$0xff]
        %v392 = vld [vmem:[#allocation2 + $0x110] sm:$0xff]
        %v393 = vld [vmem:[#allocation2 + $0x118] sm:$0xff]
        %v394 = vld [vmem:[#allocation2 + $0x120] sm:$0xff]
        %v395 = vld [vmem:[#allocation2 + $0x128] sm:$0xff]
        %v396 = vld [vmem:[#allocation2 + $0x130] sm:$0xff]
        %v397 = vld [vmem:[#allocation2 + $0x138] sm:$0xff]
        %v398 = vld [vmem:[#allocation2 + $0x140] sm:$0xff]
        %v399 = vld [vmem:[#allocation2 + $0x148] sm:$0xff]
        %v400 = vld [vmem:[#allocation2 + $0x150] sm:$0xff]
        %v401 = vld [vmem:[#allocation2 + $0x158] sm:$0xff]
        %v402 = vld [vmem:[#allocation2 + $0x160] sm:$0xff]
        %v403 = vld [vmem:[#allocation2 + $0x168] sm:$0xff]
        %v404 = vld [vmem:[#allocation2 + $0x170] sm:$0xff]
        %v405 = vld [vmem:[#allocation2 + $0x178] sm:$0xff]
        %v406 = vld [vmem:[#allocation2 + $0x180] sm:$0xff]
        %v407 = vld [vmem:[#allocation2 + $0x188] sm:$0xff]
        %v408 = vld [vmem:[#allocation2 + $0x190] sm:$0xff]
        %v409 = vld [vmem:[#allocation2 + $0x198] sm:$0xff]
        %v410 = vld [vmem:[#allocation2 + $0x1a0] sm:$0xff]
        %v411 = vld [vmem:[#allocation2 + $0x1a8] sm:$0xff]
        %v412 = vld [vmem:[#allocation2 + $0x1b0] sm:$0xff]
        %v413 = vld [vmem:[#allocation2 + $0x1b8] sm:$0xff]
        %v414 = vld [vmem:[#allocation2 + $0x1c0] sm:$0xff]
        %v415 = vld [vmem:[#allocation2 + $0x1c8] sm:$0xff]
        %v416 = vld [vmem:[#allocation2 + $0x1d0] sm:$0xff]
        %v417 = vld [vmem:[#allocation2 + $0x1d8] sm:$0xff]
        %v418 = vld [vmem:[#allocation2 + $0x1e0] sm:$0xff]
        %v419 = vld [vmem:[#allocation2 + $0x1e8] sm:$0xff]
        %v420 = vld [vmem:[#allocation2 + $0x1f0] sm:$0xff]
        %v421 = vld [vmem:[#allocation2 + $0x1f8] sm:$0xff]
        %v422 = vld [vmem:[#allocation3] sm:$0xff]
        %v423 = vld [vmem:[#allocation3 + $0x8] sm:$0xff]
        %v424 = vld [vmem:[#allocation3 + $0x10] sm:$0xff]
        %v425 = vld [vmem:[#allocation3 + $0x18] sm:$0xff]
        %v426 = vld [vmem:[#allocation3 + $0x20] sm:$0xff]
        %v427 = vld [vmem:[#allocation3 + $0x28] sm:$0xff]
        %v428 = vld [vmem:[#allocation3 + $0x30] sm:$0xff]
        %v429 = vld [vmem:[#allocation3 + $0x38] sm:$0xff]
        %v430 = vld [vmem:[#allocation3 + $0x40] sm:$0xff]
        %v431 = vld [vmem:[#allocation3 + $0x48] sm:$0xff]
        %v432 = vld [vmem:[#allocation3 + $0x50] sm:$0xff]
        %v433 = vld [vmem:[#allocation3 + $0x58] sm:$0xff]
        %v434 = vld [vmem:[#allocation3 + $0x60] sm:$0xff]
        %v435 = vld [vmem:[#allocation3 + $0x68] sm:$0xff]
        %v436 = vld [vmem:[#allocation3 + $0x70] sm:$0xff]
        %v437 = vld [vmem:[#allocation3 + $0x78] sm:$0xff]
        %v438 = vld [vmem:[#allocation3 + $0x80] sm:$0xff]
        %v439 = vld [vmem:[#allocation3 + $0x88] sm:$0xff]
        %v440 = vld [vmem:[#allocation3 + $0x90] sm:$0xff]
        %v441 = vld [vmem:[#allocation3 + $0x98] sm:$0xff]
        %v442 = vld [vmem:[#allocation3 + $0xa0] sm:$0xff]
        %v443 = vld [vmem:[#allocation3 + $0xa8] sm:$0xff]
        %v444 = vld [vmem:[#allocation3 + $0xb0] sm:$0xff]
        %v445 = vld [vmem:[#allocation3 + $0xb8] sm:$0xff]
        %v446 = vld [vmem:[#allocation3 + $0xc0] sm:$0xff]
        %v447 = vld [vmem:[#allocation3 + $0xc8] sm:$0xff]
        %v448 = vld [vmem:[#allocation3 + $0xd0] sm:$0xff]
        %v449 = vld [vmem:[#allocation3 + $0xd8] sm:$0xff]
        %v450 = vld [vmem:[#allocation3 + $0xe0] sm:$0xff]
        %v451 = vld [vmem:[#allocation3 + $0xe8] sm:$0xff]
        %v452 = vld [vmem:[#allocation3 + $0xf0] sm:$0xff]
        %v453 = vld [vmem:[#allocation3 + $0xf8] sm:$0xff]
        %v454 = vld [vmem:[%s244] sm:$0xff]
        %v455 = vld [vmem:[%s244 + $0x8] sm:$0xff]
        %v456 = vld [vmem:[%s244 + $0x10] sm:$0xff]
        %v457 = vld [vmem:[%s244 + $0x18] sm:$0xff]
        %v458 = vld [vmem:[%s244 + $0x20] sm:$0xff]
        %v459 = vld [vmem:[%s244 + $0x28] sm:$0xff]
        %v460 = vld [vmem:[%s244 + $0x30] sm:$0xff]
        %v461 = vld [vmem:[%s244 + $0x38] sm:$0xff]
        %v462 = vld [vmem:[%s244 + $0x40] sm:$0xff]
        %v463 = vld [vmem:[%s244 + $0x48] sm:$0xff]
        %v464 = vld [vmem:[%s244 + $0x50] sm:$0xff]
        %v465 = vld [vmem:[%s244 + $0x58] sm:$0xff]
        %v466 = vld [vmem:[%s244 + $0x60] sm:$0xff]
        %v467 = vld [vmem:[%s244 + $0x68] sm:$0xff]
        %v468 = vld [vmem:[%s244 + $0x70] sm:$0xff]
        %v469 = vld [vmem:[%s244 + $0x78] sm:$0xff]
        %v470 = vld [vmem:[%s244 + $0x80] sm:$0xff]
        %v471 = vld [vmem:[%s244 + $0x88] sm:$0xff]
        %v472 = vld [vmem:[%s244 + $0x90] sm:$0xff]
        %v473 = vld [vmem:[%s244 + $0x98] sm:$0xff]
        %v474 = vld [vmem:[%s244 + $0xa0] sm:$0xff]
        %v475 = vld [vmem:[%s244 + $0xa8] sm:$0xff]
        %v476 = vld [vmem:[%s244 + $0xb0] sm:$0xff]
        %v477 = vld [vmem:[%s244 + $0xb8] sm:$0xff]
        %v478 = vld [vmem:[%s244 + $0xc0] sm:$0xff]
        %v479 = vld [vmem:[%s244 + $0xc8] sm:$0xff]
        %v480 = vld [vmem:[%s244 + $0xd0] sm:$0xff]
        %v481 = vld [vmem:[%s244 + $0xd8] sm:$0xff]
        %v482 = vld [vmem:[%s244 + $0xe0] sm:$0xff]
        %v483 = vld [vmem:[%s244 + $0xe8] sm:$0xff]
        %v484 = vld [vmem:[%s244 + $0xf0] sm:$0xff]
        %v485 = vld [vmem:[%s244 + $0xf8] sm:$0xff]
        %v518 = vunpack.c.l.b16 %v422
        %v519 = vunpack.c.h.b16 %v422
        %v520 = vunpack.c.l.b16 %v423
        %v521 = vunpack.c.h.b16 %v423
        %v522 = vunpack.c.l.b16 %v424
        %v523 = vunpack.c.h.b16 %v424
        %v524 = vunpack.c.l.b16 %v425
        %v525 = vunpack.c.h.b16 %v425
        %v526 = vunpack.c.l.b16 %v426
        %v527 = vunpack.c.h.b16 %v426
        %v528 = vunpack.c.l.b16 %v427
        %v529 = vunpack.c.h.b16 %v427
        %v530 = vunpack.c.l.b16 %v428
        %v531 = vunpack.c.h.b16 %v428
        %v532 = vunpack.c.l.b16 %v429
        %v533 = vunpack.c.h.b16 %v429
        %v534 = vunpack.c.l.b16 %v430
        %v535 = vunpack.c.h.b16 %v430
        %v536 = vunpack.c.l.b16 %v431
        %v537 = vunpack.c.h.b16 %v431
        %v538 = vunpack.c.l.b16 %v432
        %v539 = vunpack.c.h.b16 %v432
        %v540 = vunpack.c.l.b16 %v433
        %v541 = vunpack.c.h.b16 %v433
        %v542 = vunpack.c.l.b16 %v434
        %v543 = vunpack.c.h.b16 %v434
        %v544 = vunpack.c.l.b16 %v435
        %v545 = vunpack.c.h.b16 %v435
        %v546 = vunpack.c.l.b16 %v436
        %v547 = vunpack.c.h.b16 %v436
        %v548 = vunpack.c.l.b16 %v437
        %v549 = vunpack.c.h.b16 %v437
        %v550 = vunpack.c.l.b16 %v438
        %v551 = vunpack.c.h.b16 %v438
        %v552 = vunpack.c.l.b16 %v439
        %v553 = vunpack.c.h.b16 %v439
        %v554 = vunpack.c.l.b16 %v440
        %v555 = vunpack.c.h.b16 %v440
        %v556 = vunpack.c.l.b16 %v441
        %v557 = vunpack.c.h.b16 %v441
        %v558 = vunpack.c.l.b16 %v442
        %v559 = vunpack.c.h.b16 %v442
        %v560 = vunpack.c.l.b16 %v443
        %v561 = vunpack.c.h.b16 %v443
        %v562 = vunpack.c.l.b16 %v444
        %v563 = vunpack.c.h.b16 %v444
        %v564 = vunpack.c.l.b16 %v445
        %v565 = vunpack.c.h.b16 %v445
        %v566 = vunpack.c.l.b16 %v446
        %v567 = vunpack.c.h.b16 %v446
        %v568 = vunpack.c.l.b16 %v447
        %v569 = vunpack.c.h.b16 %v447
        %v570 = vunpack.c.l.b16 %v448
        %v571 = vunpack.c.h.b16 %v448
        %v572 = vunpack.c.l.b16 %v449
        %v573 = vunpack.c.h.b16 %v449
        %v574 = vunpack.c.l.b16 %v450
        %v575 = vunpack.c.h.b16 %v450
        %v576 = vunpack.c.l.b16 %v451
        %v577 = vunpack.c.h.b16 %v451
        %v578 = vunpack.c.l.b16 %v452
        %v579 = vunpack.c.h.b16 %v452
        %v580 = vunpack.c.l.b16 %v453
        %v581 = vunpack.c.h.b16 %v453
        %v582 = vpack.c.b16 %v520, %v518
        %v583 = vpack.c.b16 %v521, %v519
        %v584 = vpack.c.b16 %v524, %v522
        %v585 = vpack.c.b16 %v525, %v523
        %v586 = vpack.c.b16 %v528, %v526
        %v587 = vpack.c.b16 %v529, %v527
        %v588 = vpack.c.b16 %v532, %v530
        %v589 = vpack.c.b16 %v533, %v531
        %v590 = vpack.c.b16 %v536, %v534
        %v591 = vpack.c.b16 %v537, %v535
        %v592 = vpack.c.b16 %v540, %v538
        %v593 = vpack.c.b16 %v541, %v539
        %v594 = vpack.c.b16 %v544, %v542
        %v595 = vpack.c.b16 %v545, %v543
        %v596 = vpack.c.b16 %v548, %v546
        %v597 = vpack.c.b16 %v549, %v547
        %v598 = vpack.c.b16 %v552, %v550
        %v599 = vpack.c.b16 %v553, %v551
        %v600 = vpack.c.b16 %v556, %v554
        %v601 = vpack.c.b16 %v557, %v555
        %v602 = vpack.c.b16 %v560, %v558
        %v603 = vpack.c.b16 %v561, %v559
        %v604 = vpack.c.b16 %v564, %v562
        %v605 = vpack.c.b16 %v565, %v563
        %v606 = vpack.c.b16 %v568, %v566
        %v607 = vpack.c.b16 %v569, %v567
        %v608 = vpack.c.b16 %v572, %v570
        %v609 = vpack.c.b16 %v573, %v571
        %v610 = vpack.c.b16 %v576, %v574
        %v611 = vpack.c.b16 %v577, %v575
        %v612 = vpack.c.b16 %v580, %v578
        %v613 = vpack.c.b16 %v581, %v579
        %v678 = vunpack.c.l.b16 %v454
        %v679 = vunpack.c.h.b16 %v454
        %v680 = vunpack.c.l.b16 %v455
        %v681 = vunpack.c.h.b16 %v455
        %v682 = vunpack.c.l.b16 %v456
        %v683 = vunpack.c.h.b16 %v456
        %v684 = vunpack.c.l.b16 %v457
        %v685 = vunpack.c.h.b16 %v457
        %v686 = vunpack.c.l.b16 %v458
        %v687 = vunpack.c.h.b16 %v458
        %v688 = vunpack.c.l.b16 %v459
        %v689 = vunpack.c.h.b16 %v459
        %v690 = vunpack.c.l.b16 %v460
        %v691 = vunpack.c.h.b16 %v460
        %v692 = vunpack.c.l.b16 %v461
        %v693 = vunpack.c.h.b16 %v461
        %v694 = vunpack.c.l.b16 %v462
        %v695 = vunpack.c.h.b16 %v462
        %v696 = vunpack.c.l.b16 %v463
        %v697 = vunpack.c.h.b16 %v463
        %v698 = vunpack.c.l.b16 %v464
        %v699 = vunpack.c.h.b16 %v464
        %v700 = vunpack.c.l.b16 %v465
        %v701 = vunpack.c.h.b16 %v465
        %v702 = vunpack.c.l.b16 %v466
        %v703 = vunpack.c.h.b16 %v466
        %v704 = vunpack.c.l.b16 %v467
        %v705 = vunpack.c.h.b16 %v467
        %v706 = vunpack.c.l.b16 %v468
        %v707 = vunpack.c.h.b16 %v468
        %v708 = vunpack.c.l.b16 %v469
        %v709 = vunpack.c.h.b16 %v469
        %v710 = vunpack.c.l.b16 %v470
        %v711 = vunpack.c.h.b16 %v470
        %v712 = vunpack.c.l.b16 %v471
        %v713 = vunpack.c.h.b16 %v471
        %v714 = vunpack.c.l.b16 %v472
        %v715 = vunpack.c.h.b16 %v472
        %v716 = vunpack.c.l.b16 %v473
        %v717 = vunpack.c.h.b16 %v473
        %v718 = vunpack.c.l.b16 %v474
        %v719 = vunpack.c.h.b16 %v474
        %v720 = vunpack.c.l.b16 %v475
        %v721 = vunpack.c.h.b16 %v475
        %v722 = vunpack.c.l.b16 %v476
        %v723 = vunpack.c.h.b16 %v476
        %v724 = vunpack.c.l.b16 %v477
        %v725 = vunpack.c.h.b16 %v477
        %v726 = vunpack.c.l.b16 %v478
        %v727 = vunpack.c.h.b16 %v478
        %v728 = vunpack.c.l.b16 %v479
        %v729 = vunpack.c.h.b16 %v479
        %v730 = vunpack.c.l.b16 %v480
        %v731 = vunpack.c.h.b16 %v480
        %v732 = vunpack.c.l.b16 %v481
        %v733 = vunpack.c.h.b16 %v481
        %v734 = vunpack.c.l.b16 %v482
        %v735 = vunpack.c.h.b16 %v482
        %v736 = vunpack.c.l.b16 %v483
        %v737 = vunpack.c.h.b16 %v483
        %v738 = vunpack.c.l.b16 %v484
        %v739 = vunpack.c.h.b16 %v484
        %v740 = vunpack.c.l.b16 %v485
        %v741 = vunpack.c.h.b16 %v485
        %v742 = vpack.c.b16 %v680, %v678
        %v743 = vpack.c.b16 %v681, %v679
        %v744 = vpack.c.b16 %v684, %v682
        %v745 = vpack.c.b16 %v685, %v683
        %v746 = vpack.c.b16 %v688, %v686
        %v747 = vpack.c.b16 %v689, %v687
        %v748 = vpack.c.b16 %v692, %v690
        %v749 = vpack.c.b16 %v693, %v691
        %v750 = vpack.c.b16 %v696, %v694
        %v751 = vpack.c.b16 %v697, %v695
        %v752 = vpack.c.b16 %v700, %v698
        %v753 = vpack.c.b16 %v701, %v699
        %v754 = vpack.c.b16 %v704, %v702
        %v755 = vpack.c.b16 %v705, %v703
        %v756 = vpack.c.b16 %v708, %v706
        %v757 = vpack.c.b16 %v709, %v707
        %v758 = vpack.c.b16 %v712, %v710
        %v759 = vpack.c.b16 %v713, %v711
        %v760 = vpack.c.b16 %v716, %v714
        %v761 = vpack.c.b16 %v717, %v715
        %v762 = vpack.c.b16 %v720, %v718
        %v763 = vpack.c.b16 %v721, %v719
        %v764 = vpack.c.b16 %v724, %v722
        %v765 = vpack.c.b16 %v725, %v723
        %v766 = vpack.c.b16 %v728, %v726
        %v767 = vpack.c.b16 %v729, %v727
        %v768 = vpack.c.b16 %v732, %v730
        %v769 = vpack.c.b16 %v733, %v731
        %v770 = vpack.c.b16 %v736, %v734
        %v771 = vpack.c.b16 %v737, %v735
        %v772 = vpack.c.b16 %v740, %v738
        %v773 = vpack.c.b16 %v741, %v739
        %806 = vmatpush.bf16.msra.mxu0 %v756
        %807 = vmatpush.bf16.msra.mxu0 %v754
        %808 = vmatpush.bf16.msra.mxu0 %v752
        %809 = vmatpush.bf16.msra.mxu0 %v750
        %810 = vmatpush.bf16.msra.mxu0 %v748
        %811 = vmatpush.bf16.msra.mxu0 %v746
        %812 = vmatpush.bf16.msra.mxu0 %v744
        %813 = vmatpush.bf16.msra.mxu0 %v742
        %814 = vmatmul.bf16.gmra.mxu0 %v582
        %v815 = vpop.f32.mrf.mxu0
        %v816 = vadd.f32 0.0, %v815
        %v817 = vpop.f32.mrf.mxu0
        %v818 = vadd.f32 0.0, %v817
        %819 = vmatmul.bf16.gmra.mxu0 %v584
        %v820 = vpop.f32.mrf.mxu0
        %v821 = vadd.f32 0.0, %v820
        %v822 = vpop.f32.mrf.mxu0
        %v823 = vadd.f32 0.0, %v822
        %824 = vmatmul.bf16.gmra.mxu0 %v586
        %v825 = vpop.f32.mrf.mxu0
        %v826 = vadd.f32 0.0, %v825
        %v827 = vpop.f32.mrf.mxu0
        %v828 = vadd.f32 0.0, %v827
        %829 = vmatmul.bf16.gmra.mxu0 %v588
        %v830 = vpop.f32.mrf.mxu0
        %v831 = vadd.f32 0.0, %v830
        %v832 = vpop.f32.mrf.mxu0
        %v833 = vadd.f32 0.0, %v832
        %834 = vmatmul.bf16.gmra.mxu0 %v590
        %v835 = vpop.f32.mrf.mxu0
        %v836 = vadd.f32 0.0, %v835
        %v837 = vpop.f32.mrf.mxu0
        %v838 = vadd.f32 0.0, %v837
        %839 = vmatmul.bf16.gmra.mxu0 %v592
        %v840 = vpop.f32.mrf.mxu0
        %v841 = vadd.f32 0.0, %v840
        %v842 = vpop.f32.mrf.mxu0
        %v843 = vadd.f32 0.0, %v842
        %844 = vmatmul.bf16.gmra.mxu0 %v594
        %v845 = vpop.f32.mrf.mxu0
        %v846 = vadd.f32 0.0, %v845
        %v847 = vpop.f32.mrf.mxu0
        %v848 = vadd.f32 0.0, %v847
        %849 = vmatmul.bf16.gmra.mxu0 %v596
        %v850 = vpop.f32.mrf.mxu0
        %v851 = vadd.f32 0.0, %v850
        %v852 = vpop.f32.mrf.mxu0
        %v853 = vadd.f32 0.0, %v852
        %854 = vmatmul.bf16.gmra.mxu0 %v598
        %v855 = vpop.f32.mrf.mxu0
        %v856 = vadd.f32 0.0, %v855
        %v857 = vpop.f32.mrf.mxu0
        %v858 = vadd.f32 0.0, %v857
        %859 = vmatmul.bf16.gmra.mxu0 %v600
        %v860 = vpop.f32.mrf.mxu0
        %v861 = vadd.f32 0.0, %v860
        %v862 = vpop.f32.mrf.mxu0
        %v863 = vadd.f32 0.0, %v862
        %864 = vmatmul.bf16.gmra.mxu0 %v602
        %v865 = vpop.f32.mrf.mxu0
        %v866 = vadd.f32 0.0, %v865
        %v867 = vpop.f32.mrf.mxu0
        %v868 = vadd.f32 0.0, %v867
        %869 = vmatmul.bf16.gmra.mxu0 %v604
        %v870 = vpop.f32.mrf.mxu0
        %v871 = vadd.f32 0.0, %v870
        %v872 = vpop.f32.mrf.mxu0
        %v873 = vadd.f32 0.0, %v872
        %874 = vmatmul.bf16.gmra.mxu0 %v606
        %v875 = vpop.f32.mrf.mxu0
        %v876 = vadd.f32 0.0, %v875
        %v877 = vpop.f32.mrf.mxu0
        %v878 = vadd.f32 0.0, %v877
        %879 = vmatmul.bf16.gmra.mxu0 %v608
        %v880 = vpop.f32.mrf.mxu0
        %v881 = vadd.f32 0.0, %v880
        %v882 = vpop.f32.mrf.mxu0
        %v883 = vadd.f32 0.0, %v882
        %884 = vmatmul.bf16.gmra.mxu0 %v610
        %v885 = vpop.f32.mrf.mxu0
        %v886 = vadd.f32 0.0, %v885
        %v887 = vpop.f32.mrf.mxu0
        %v888 = vadd.f32 0.0, %v887
        %889 = vmatmul.bf16.gmra.mxu0 %v612
        %v890 = vpop.f32.mrf.mxu0
        %v891 = vadd.f32 0.0, %v890
        %v892 = vpop.f32.mrf.mxu0
        %v893 = vadd.f32 0.0, %v892
        %894 = vdwg.mxu0
        %895 = vmatpush.bf16.msra.mxu0 %v772
        %896 = vmatpush.bf16.msra.mxu0 %v770
        %897 = vmatpush.bf16.msra.mxu0 %v768
        %898 = vmatpush.bf16.msra.mxu0 %v766
        %899 = vmatpush.bf16.msra.mxu0 %v764
        %900 = vmatpush.bf16.msra.mxu0 %v762
        %901 = vmatpush.bf16.msra.mxu0 %v760
        %902 = vmatpush.bf16.msra.mxu0 %v758
        %903 = vmatmul.bf16.gmra.mxu0 %v583
        %v904 = vpop.f32.mrf.mxu0
        %v905 = vadd.f32 %v816, %v904
        %v906 = vpop.f32.mrf.mxu0
        %v907 = vadd.f32 %v818, %v906
        %908 = vmatmul.bf16.gmra.mxu0 %v585
        %v909 = vpop.f32.mrf.mxu0
        %v910 = vadd.f32 %v821, %v909
        %v911 = vpop.f32.mrf.mxu0
        %v912 = vadd.f32 %v823, %v911
        %913 = vmatmul.bf16.gmra.mxu0 %v587
        %v914 = vpop.f32.mrf.mxu0
        %v915 = vadd.f32 %v826, %v914
        %v916 = vpop.f32.mrf.mxu0
        %v917 = vadd.f32 %v828, %v916
        %918 = vmatmul.bf16.gmra.mxu0 %v589
        %v919 = vpop.f32.mrf.mxu0
        %v920 = vadd.f32 %v831, %v919
        %v921 = vpop.f32.mrf.mxu0
        %v922 = vadd.f32 %v833, %v921
        %923 = vmatmul.bf16.gmra.mxu0 %v591
        %v924 = vpop.f32.mrf.mxu0
        %v925 = vadd.f32 %v836, %v924
        %v926 = vpop.f32.mrf.mxu0
        %v927 = vadd.f32 %v838, %v926
        %928 = vmatmul.bf16.gmra.mxu0 %v593
        %v929 = vpop.f32.mrf.mxu0
        %v930 = vadd.f32 %v841, %v929
        %v931 = vpop.f32.mrf.mxu0
        %v932 = vadd.f32 %v843, %v931
        %933 = vmatmul.bf16.gmra.mxu0 %v595
        %v934 = vpop.f32.mrf.mxu0
        %v935 = vadd.f32 %v846, %v934
        %v936 = vpop.f32.mrf.mxu0
        %v937 = vadd.f32 %v848, %v936
        %938 = vmatmul.bf16.gmra.mxu0 %v597
        %v939 = vpop.f32.mrf.mxu0
        %v940 = vadd.f32 %v851, %v939
        %v941 = vpop.f32.mrf.mxu0
        %v942 = vadd.f32 %v853, %v941
        %943 = vmatmul.bf16.gmra.mxu0 %v599
        %v944 = vpop.f32.mrf.mxu0
        %v945 = vadd.f32 %v856, %v944
        %v946 = vpop.f32.mrf.mxu0
        %v947 = vadd.f32 %v858, %v946
        %948 = vmatmul.bf16.gmra.mxu0 %v601
        %v949 = vpop.f32.mrf.mxu0
        %v950 = vadd.f32 %v861, %v949
        %v951 = vpop.f32.mrf.mxu0
        %v952 = vadd.f32 %v863, %v951
        %953 = vmatmul.bf16.gmra.mxu0 %v603
        %v954 = vpop.f32.mrf.mxu0
        %v955 = vadd.f32 %v866, %v954
        %v956 = vpop.f32.mrf.mxu0
        %v957 = vadd.f32 %v868, %v956
        %958 = vmatmul.bf16.gmra.mxu0 %v605
        %v959 = vpop.f32.mrf.mxu0
        %v960 = vadd.f32 %v871, %v959
        %v961 = vpop.f32.mrf.mxu0
        %v962 = vadd.f32 %v873, %v961
        %963 = vmatmul.bf16.gmra.mxu0 %v607
        %v964 = vpop.f32.mrf.mxu0
        %v965 = vadd.f32 %v876, %v964
        %v966 = vpop.f32.mrf.mxu0
        %v967 = vadd.f32 %v878, %v966
        %968 = vmatmul.bf16.gmra.mxu0 %v609
        %v969 = vpop.f32.mrf.mxu0
        %v970 = vadd.f32 %v881, %v969
        %v971 = vpop.f32.mrf.mxu0
        %v972 = vadd.f32 %v883, %v971
        %973 = vmatmul.bf16.gmra.mxu0 %v611
        %v974 = vpop.f32.mrf.mxu0
        %v975 = vadd.f32 %v886, %v974
        %v976 = vpop.f32.mrf.mxu0
        %v977 = vadd.f32 %v888, %v976
        %978 = vmatmul.bf16.gmra.mxu0 %v613
        %v979 = vpop.f32.mrf.mxu0
        %v980 = vadd.f32 %v891, %v979
        %v981 = vpop.f32.mrf.mxu0
        %v982 = vadd.f32 %v893, %v981
        %983 = vdwg.mxu0
        %984 = vmatpush.bf16.msra.mxu0 %v757
        %985 = vmatpush.bf16.msra.mxu0 %v755
        %986 = vmatpush.bf16.msra.mxu0 %v753
        %987 = vmatpush.bf16.msra.mxu0 %v751
        %988 = vmatpush.bf16.msra.mxu0 %v749
        %989 = vmatpush.bf16.msra.mxu0 %v747
        %990 = vmatpush.bf16.msra.mxu0 %v745
        %991 = vmatpush.bf16.msra.mxu0 %v743
        %992 = vmatmul.bf16.gmra.mxu0 %v582
        %v993 = vpop.f32.mrf.mxu0
        %v994 = vadd.f32 0.0, %v993
        %v995 = vpop.f32.mrf.mxu0
        %v996 = vadd.f32 0.0, %v995
        %997 = vmatmul.bf16.gmra.mxu0 %v584
        %v998 = vpop.f32.mrf.mxu0
        %v999 = vadd.f32 0.0, %v998
        %v1000 = vpop.f32.mrf.mxu0
        %v1001 = vadd.f32 0.0, %v1000
        %1002 = vmatmul.bf16.gmra.mxu0 %v586
        %v1003 = vpop.f32.mrf.mxu0
        %v1004 = vadd.f32 0.0, %v1003
        %v1005 = vpop.f32.mrf.mxu0
        %v1006 = vadd.f32 0.0, %v1005
        %1007 = vmatmul.bf16.gmra.mxu0 %v588
        %v1008 = vpop.f32.mrf.mxu0
        %v1009 = vadd.f32 0.0, %v1008
        %v1010 = vpop.f32.mrf.mxu0
        %v1011 = vadd.f32 0.0, %v1010
        %1012 = vmatmul.bf16.gmra.mxu0 %v590
        %v1013 = vpop.f32.mrf.mxu0
        %v1014 = vadd.f32 0.0, %v1013
        %v1015 = vpop.f32.mrf.mxu0
        %v1016 = vadd.f32 0.0, %v1015
        %1017 = vmatmul.bf16.gmra.mxu0 %v592
        %v1018 = vpop.f32.mrf.mxu0
        %v1019 = vadd.f32 0.0, %v1018
        %v1020 = vpop.f32.mrf.mxu0
        %v1021 = vadd.f32 0.0, %v1020
        %1022 = vmatmul.bf16.gmra.mxu0 %v594
        %v1023 = vpop.f32.mrf.mxu0
        %v1024 = vadd.f32 0.0, %v1023
        %v1025 = vpop.f32.mrf.mxu0
        %v1026 = vadd.f32 0.0, %v1025
        %1027 = vmatmul.bf16.gmra.mxu0 %v596
        %v1028 = vpop.f32.mrf.mxu0
        %v1029 = vadd.f32 0.0, %v1028
        %v1030 = vpop.f32.mrf.mxu0
        %v1031 = vadd.f32 0.0, %v1030
        %1032 = vmatmul.bf16.gmra.mxu0 %v598
        %v1033 = vpop.f32.mrf.mxu0
        %v1034 = vadd.f32 0.0, %v1033
        %v1035 = vpop.f32.mrf.mxu0
        %v1036 = vadd.f32 0.0, %v1035
        %1037 = vmatmul.bf16.gmra.mxu0 %v600
        %v1038 = vpop.f32.mrf.mxu0
        %v1039 = vadd.f32 0.0, %v1038
        %v1040 = vpop.f32.mrf.mxu0
        %v1041 = vadd.f32 0.0, %v1040
        %1042 = vmatmul.bf16.gmra.mxu0 %v602
        %v1043 = vpop.f32.mrf.mxu0
        %v1044 = vadd.f32 0.0, %v1043
        %v1045 = vpop.f32.mrf.mxu0
        %v1046 = vadd.f32 0.0, %v1045
        %1047 = vmatmul.bf16.gmra.mxu0 %v604
        %v1048 = vpop.f32.mrf.mxu0
        %v1049 = vadd.f32 0.0, %v1048
        %v1050 = vpop.f32.mrf.mxu0
        %v1051 = vadd.f32 0.0, %v1050
        %1052 = vmatmul.bf16.gmra.mxu0 %v606
        %v1053 = vpop.f32.mrf.mxu0
        %v1054 = vadd.f32 0.0, %v1053
        %v1055 = vpop.f32.mrf.mxu0
        %v1056 = vadd.f32 0.0, %v1055
        %1057 = vmatmul.bf16.gmra.mxu0 %v608
        %v1058 = vpop.f32.mrf.mxu0
        %v1059 = vadd.f32 0.0, %v1058
        %v1060 = vpop.f32.mrf.mxu0
        %v1061 = vadd.f32 0.0, %v1060
        %1062 = vmatmul.bf16.gmra.mxu0 %v610
        %v1063 = vpop.f32.mrf.mxu0
        %v1064 = vadd.f32 0.0, %v1063
        %v1065 = vpop.f32.mrf.mxu0
        %v1066 = vadd.f32 0.0, %v1065
        %1067 = vmatmul.bf16.gmra.mxu0 %v612
        %v1068 = vpop.f32.mrf.mxu0
        %v1069 = vadd.f32 0.0, %v1068
        %v1070 = vpop.f32.mrf.mxu0
        %v1071 = vadd.f32 0.0, %v1070
        %1072 = vdwg.mxu0
        %1073 = vmatpush.bf16.msra.mxu0 %v773
        %1074 = vmatpush.bf16.msra.mxu0 %v771
        %1075 = vmatpush.bf16.msra.mxu0 %v769
        %1076 = vmatpush.bf16.msra.mxu0 %v767
        %1077 = vmatpush.bf16.msra.mxu0 %v765
        %1078 = vmatpush.bf16.msra.mxu0 %v763
        %1079 = vmatpush.bf16.msra.mxu0 %v761
        %1080 = vmatpush.bf16.msra.mxu0 %v759
        %1081 = vmatmul.bf16.gmra.mxu0 %v583
        %v1082 = vpop.f32.mrf.mxu0
        %v1083 = vadd.f32 %v994, %v1082
        %v1084 = vpop.f32.mrf.mxu0
        %v1085 = vadd.f32 %v996, %v1084
        %1086 = vmatmul.bf16.gmra.mxu0 %v585
        %v1087 = vpop.f32.mrf.mxu0
        %v1088 = vadd.f32 %v999, %v1087
        %v1089 = vpop.f32.mrf.mxu0
        %v1090 = vadd.f32 %v1001, %v1089
        %1091 = vmatmul.bf16.gmra.mxu0 %v587
        %v1092 = vpop.f32.mrf.mxu0
        %v1093 = vadd.f32 %v1004, %v1092
        %v1094 = vpop.f32.mrf.mxu0
        %v1095 = vadd.f32 %v1006, %v1094
        %1096 = vmatmul.bf16.gmra.mxu0 %v589
        %v1097 = vpop.f32.mrf.mxu0
        %v1098 = vadd.f32 %v1009, %v1097
        %v1099 = vpop.f32.mrf.mxu0
        %v1100 = vadd.f32 %v1011, %v1099
        %1101 = vmatmul.bf16.gmra.mxu0 %v591
        %v1102 = vpop.f32.mrf.mxu0
        %v1103 = vadd.f32 %v1014, %v1102
        %v1104 = vpop.f32.mrf.mxu0
        %v1105 = vadd.f32 %v1016, %v1104
        %1106 = vmatmul.bf16.gmra.mxu0 %v593
        %v1107 = vpop.f32.mrf.mxu0
        %v1108 = vadd.f32 %v1019, %v1107
        %v1109 = vpop.f32.mrf.mxu0
        %v1110 = vadd.f32 %v1021, %v1109
        %1111 = vmatmul.bf16.gmra.mxu0 %v595
        %v1112 = vpop.f32.mrf.mxu0
        %v1113 = vadd.f32 %v1024, %v1112
        %v1114 = vpop.f32.mrf.mxu0
        %v1115 = vadd.f32 %v1026, %v1114
        %1116 = vmatmul.bf16.gmra.mxu0 %v597
        %v1117 = vpop.f32.mrf.mxu0
        %v1118 = vadd.f32 %v1029, %v1117
        %v1119 = vpop.f32.mrf.mxu0
        %v1120 = vadd.f32 %v1031, %v1119
        %1121 = vmatmul.bf16.gmra.mxu0 %v599
        %v1122 = vpop.f32.mrf.mxu0
        %v1123 = vadd.f32 %v1034, %v1122
        %v1124 = vpop.f32.mrf.mxu0
        %v1125 = vadd.f32 %v1036, %v1124
        %1126 = vmatmul.bf16.gmra.mxu0 %v601
        %v1127 = vpop.f32.mrf.mxu0
        %v1128 = vadd.f32 %v1039, %v1127
        %v1129 = vpop.f32.mrf.mxu0
        %v1130 = vadd.f32 %v1041, %v1129
        %1131 = vmatmul.bf16.gmra.mxu0 %v603
        %v1132 = vpop.f32.mrf.mxu0
        %v1133 = vadd.f32 %v1044, %v1132
        %v1134 = vpop.f32.mrf.mxu0
        %v1135 = vadd.f32 %v1046, %v1134
        %1136 = vmatmul.bf16.gmra.mxu0 %v605
        %v1137 = vpop.f32.mrf.mxu0
        %v1138 = vadd.f32 %v1049, %v1137
        %v1139 = vpop.f32.mrf.mxu0
        %v1140 = vadd.f32 %v1051, %v1139
        %1141 = vmatmul.bf16.gmra.mxu0 %v607
        %v1142 = vpop.f32.mrf.mxu0
        %v1143 = vadd.f32 %v1054, %v1142
        %v1144 = vpop.f32.mrf.mxu0
        %v1145 = vadd.f32 %v1056, %v1144
        %1146 = vmatmul.bf16.gmra.mxu0 %v609
        %v1147 = vpop.f32.mrf.mxu0
        %v1148 = vadd.f32 %v1059, %v1147
        %v1149 = vpop.f32.mrf.mxu0
        %v1150 = vadd.f32 %v1061, %v1149
        %1151 = vmatmul.bf16.gmra.mxu0 %v611
        %v1152 = vpop.f32.mrf.mxu0
        %v1153 = vadd.f32 %v1064, %v1152
        %v1154 = vpop.f32.mrf.mxu0
        %v1155 = vadd.f32 %v1066, %v1154
        %1156 = vmatmul.bf16.gmra.mxu0 %v613
        %v1157 = vpop.f32.mrf.mxu0
        %v1158 = vadd.f32 %v1069, %v1157
        %v1159 = vpop.f32.mrf.mxu0
        %v1160 = vadd.f32 %v1071, %v1159
        %1161 = vdwg.mxu0
        %v1162 = vadd.f32 %v358, %v905
        %v1163 = vadd.f32 %v359, %v1083
        %v1164 = vadd.f32 %v360, %v907
        %v1165 = vadd.f32 %v361, %v1085
        %v1166 = vadd.f32 %v362, %v910
        %v1167 = vadd.f32 %v363, %v1088
        %v1168 = vadd.f32 %v364, %v912
        %v1169 = vadd.f32 %v365, %v1090
        %v1170 = vadd.f32 %v366, %v915
        %v1171 = vadd.f32 %v367, %v1093
        %v1172 = vadd.f32 %v368, %v917
        %v1173 = vadd.f32 %v369, %v1095
        %v1174 = vadd.f32 %v370, %v920
        %v1175 = vadd.f32 %v371, %v1098
        %v1176 = vadd.f32 %v372, %v922
        %v1177 = vadd.f32 %v373, %v1100
        %v1178 = vadd.f32 %v374, %v925
        %v1179 = vadd.f32 %v375, %v1103
        %v1180 = vadd.f32 %v376, %v927
        %v1181 = vadd.f32 %v377, %v1105
        %v1182 = vadd.f32 %v378, %v930
        %v1183 = vadd.f32 %v379, %v1108
        %v1184 = vadd.f32 %v380, %v932
        %v1185 = vadd.f32 %v381, %v1110
        %v1186 = vadd.f32 %v382, %v935
        %v1187 = vadd.f32 %v383, %v1113
        %v1188 = vadd.f32 %v384, %v937
        %v1189 = vadd.f32 %v385, %v1115
        %v1190 = vadd.f32 %v386, %v940
        %v1191 = vadd.f32 %v387, %v1118
        %v1192 = vadd.f32 %v388, %v942
        %v1193 = vadd.f32 %v389, %v1120
        %v1194 = vadd.f32 %v390, %v945
        %v1195 = vadd.f32 %v391, %v1123
        %v1196 = vadd.f32 %v392, %v947
        %v1197 = vadd.f32 %v393, %v1125
        %v1198 = vadd.f32 %v394, %v950
        %v1199 = vadd.f32 %v395, %v1128
        %v1200 = vadd.f32 %v396, %v952
        %v1201 = vadd.f32 %v397, %v1130
        %v1202 = vadd.f32 %v398, %v955
        %v1203 = vadd.f32 %v399, %v1133
        %v1204 = vadd.f32 %v400, %v957
        %v1205 = vadd.f32 %v401, %v1135
        %v1206 = vadd.f32 %v402, %v960
        %v1207 = vadd.f32 %v403, %v1138
        %v1208 = vadd.f32 %v404, %v962
        %v1209 = vadd.f32 %v405, %v1140
        %v1210 = vadd.f32 %v406, %v965
        %v1211 = vadd.f32 %v407, %v1143
        %v1212 = vadd.f32 %v408, %v967
        %v1213 = vadd.f32 %v409, %v1145
        %v1214 = vadd.f32 %v410, %v970
        %v1215 = vadd.f32 %v411, %v1148
        %v1216 = vadd.f32 %v412, %v972
        %v1217 = vadd.f32 %v413, %v1150
        %v1218 = vadd.f32 %v414, %v975
        %v1219 = vadd.f32 %v415, %v1153
        %v1220 = vadd.f32 %v416, %v977
        %v1221 = vadd.f32 %v417, %v1155
        %v1222 = vadd.f32 %v418, %v980
        %v1223 = vadd.f32 %v419, %v1158
        %v1224 = vadd.f32 %v420, %v982
        %v1225 = vadd.f32 %v421, %v1160
        %1226 = vst [vmem:[#allocation2] sm:$0xff] %v1162
        %1227 = vst [vmem:[#allocation2 + $0x8] sm:$0xff] %v1163
        %1228 = vst [vmem:[#allocation2 + $0x10] sm:$0xff] %v1164
        %1229 = vst [vmem:[#allocation2 + $0x18] sm:$0xff] %v1165
        %1230 = vst [vmem:[#allocation2 + $0x20] sm:$0xff] %v1166
        %1231 = vst [vmem:[#allocation2 + $0x28] sm:$0xff] %v1167
        %1232 = vst [vmem:[#allocation2 + $0x30] sm:$0xff] %v1168
        %1233 = vst [vmem:[#allocation2 + $0x38] sm:$0xff] %v1169
        %1234 = vst [vmem:[#allocation2 + $0x40] sm:$0xff] %v1170
        %1235 = vst [vmem:[#allocation2 + $0x48] sm:$0xff] %v1171
        %1236 = vst [vmem:[#allocation2 + $0x50] sm:$0xff] %v1172
        %1237 = vst [vmem:[#allocation2 + $0x58] sm:$0xff] %v1173
        %1238 = vst [vmem:[#allocation2 + $0x60] sm:$0xff] %v1174
        %1239 = vst [vmem:[#allocation2 + $0x68] sm:$0xff] %v1175
        %1240 = vst [vmem:[#allocation2 + $0x70] sm:$0xff] %v1176
        %1241 = vst [vmem:[#allocation2 + $0x78] sm:$0xff] %v1177
        %1242 = vst [vmem:[#allocation2 + $0x80] sm:$0xff] %v1178
        %1243 = vst [vmem:[#allocation2 + $0x88] sm:$0xff] %v1179
        %1244 = vst [vmem:[#allocation2 + $0x90] sm:$0xff] %v1180
        %1245 = vst [vmem:[#allocation2 + $0x98] sm:$0xff] %v1181
        %1246 = vst [vmem:[#allocation2 + $0xa0] sm:$0xff] %v1182
        %1247 = vst [vmem:[#allocation2 + $0xa8] sm:$0xff] %v1183
        %1248 = vst [vmem:[#allocation2 + $0xb0] sm:$0xff] %v1184
        %1249 = vst [vmem:[#allocation2 + $0xb8] sm:$0xff] %v1185
        %1250 = vst [vmem:[#allocation2 + $0xc0] sm:$0xff] %v1186
        %1251 = vst [vmem:[#allocation2 + $0xc8] sm:$0xff] %v1187
        %1252 = vst [vmem:[#allocation2 + $0xd0] sm:$0xff] %v1188
        %1253 = vst [vmem:[#allocation2 + $0xd8] sm:$0xff] %v1189
        %1254 = vst [vmem:[#allocation2 + $0xe0] sm:$0xff] %v1190
        %1255 = vst [vmem:[#allocation2 + $0xe8] sm:$0xff] %v1191
        %1256 = vst [vmem:[#allocation2 + $0xf0] sm:$0xff] %v1192
        %1257 = vst [vmem:[#allocation2 + $0xf8] sm:$0xff] %v1193
        %1258 = vst [vmem:[#allocation2 + $0x100] sm:$0xff] %v1194
        %1259 = vst [vmem:[#allocation2 + $0x108] sm:$0xff] %v1195
        %1260 = vst [vmem:[#allocation2 + $0x110] sm:$0xff] %v1196
        %1261 = vst [vmem:[#allocation2 + $0x118] sm:$0xff] %v1197
        %1262 = vst [vmem:[#allocation2 + $0x120] sm:$0xff] %v1198
        %1263 = vst [vmem:[#allocation2 + $0x128] sm:$0xff] %v1199
        %1264 = vst [vmem:[#allocation2 + $0x130] sm:$0xff] %v1200
        %1265 = vst [vmem:[#allocation2 + $0x138] sm:$0xff] %v1201
        %1266 = vst [vmem:[#allocation2 + $0x140] sm:$0xff] %v1202
        %1267 = vst [vmem:[#allocation2 + $0x148] sm:$0xff] %v1203
        %1268 = vst [vmem:[#allocation2 + $0x150] sm:$0xff] %v1204
        %1269 = vst [vmem:[#allocation2 + $0x158] sm:$0xff] %v1205
        %1270 = vst [vmem:[#allocation2 + $0x160] sm:$0xff] %v1206
        %1271 = vst [vmem:[#allocation2 + $0x168] sm:$0xff] %v1207
        %1272 = vst [vmem:[#allocation2 + $0x170] sm:$0xff] %v1208
        %1273 = vst [vmem:[#allocation2 + $0x178] sm:$0xff] %v1209
        %1274 = vst [vmem:[#allocation2 + $0x180] sm:$0xff] %v1210
        %1275 = vst [vmem:[#allocation2 + $0x188] sm:$0xff] %v1211
        %1276 = vst [vmem:[#allocation2 + $0x190] sm:$0xff] %v1212
        %1277 = vst [vmem:[#allocation2 + $0x198] sm:$0xff] %v1213
        %1278 = vst [vmem:[#allocation2 + $0x1a0] sm:$0xff] %v1214
        %1279 = vst [vmem:[#allocation2 + $0x1a8] sm:$0xff] %v1215
        %1280 = vst [vmem:[#allocation2 + $0x1b0] sm:$0xff] %v1216
        %1281 = vst [vmem:[#allocation2 + $0x1b8] sm:$0xff] %v1217
        %1282 = vst [vmem:[#allocation2 + $0x1c0] sm:$0xff] %v1218
        %1283 = vst [vmem:[#allocation2 + $0x1c8] sm:$0xff] %v1219
        %1284 = vst [vmem:[#allocation2 + $0x1d0] sm:$0xff] %v1220
        %1285 = vst [vmem:[#allocation2 + $0x1d8] sm:$0xff] %v1221
        %1286 = vst [vmem:[#allocation2 + $0x1e0] sm:$0xff] %v1222
        %1287 = vst [vmem:[#allocation2 + $0x1e8] sm:$0xff] %v1223
        %1288 = vst [vmem:[#allocation2 + $0x1f0] sm:$0xff] %v1224
        %1289 = vst [vmem:[#allocation2 + $0x1f8] sm:$0xff] %v1225
        // Predicated region
        $region49: #{tpu_custom_call.1} parent=31 // pred_check
          %p1290 = pneg %p290
        $region50: #{tpu_custom_call.1} parent=31 // pred_check_branch
          %1292 = sbr.rel (%p1290) target = $region52
        $region51: #{tpu_custom_call.1} parent=31 // pred_region
          %v1293 = vld [vmem:[#allocation2] sm:$0xff]
          %v1294 = vld [vmem:[#allocation2 + $0x8] sm:$0xff]
          %v1295 = vld [vmem:[#allocation2 + $0x10] sm:$0xff]
          %v1296 = vld [vmem:[#allocation2 + $0x18] sm:$0xff]
          %v1297 = vld [vmem:[#allocation2 + $0x20] sm:$0xff]
          %v1298 = vld [vmem:[#allocation2 + $0x28] sm:$0xff]
          %v1299 = vld [vmem:[#allocation2 + $0x30] sm:$0xff]
          %v1300 = vld [vmem:[#allocation2 + $0x38] sm:$0xff]
          %v1301 = vld [vmem:[#allocation2 + $0x40] sm:$0xff]
          %v1302 = vld [vmem:[#allocation2 + $0x48] sm:$0xff]
          %v1303 = vld [vmem:[#allocation2 + $0x50] sm:$0xff]
          %v1304 = vld [vmem:[#allocation2 + $0x58] sm:$0xff]
          %v1305 = vld [vmem:[#allocation2 + $0x60] sm:$0xff]
          %v1306 = vld [vmem:[#allocation2 + $0x68] sm:$0xff]
          %v1307 = vld [vmem:[#allocation2 + $0x70] sm:$0xff]
          %v1308 = vld [vmem:[#allocation2 + $0x78] sm:$0xff]
          %v1309 = vld [vmem:[#allocation2 + $0x80] sm:$0xff]
          %v1310 = vld [vmem:[#allocation2 + $0x88] sm:$0xff]
          %v1311 = vld [vmem:[#allocation2 + $0x90] sm:$0xff]
          %v1312 = vld [vmem:[#allocation2 + $0x98] sm:$0xff]
          %v1313 = vld [vmem:[#allocation2 + $0xa0] sm:$0xff]
          %v1314 = vld [vmem:[#allocation2 + $0xa8] sm:$0xff]
          %v1315 = vld [vmem:[#allocation2 + $0xb0] sm:$0xff]
          %v1316 = vld [vmem:[#allocation2 + $0xb8] sm:$0xff]
          %v1317 = vld [vmem:[#allocation2 + $0xc0] sm:$0xff]
          %v1318 = vld [vmem:[#allocation2 + $0xc8] sm:$0xff]
          %v1319 = vld [vmem:[#allocation2 + $0xd0] sm:$0xff]
          %v1320 = vld [vmem:[#allocation2 + $0xd8] sm:$0xff]
          %v1321 = vld [vmem:[#allocation2 + $0xe0] sm:$0xff]
          %v1322 = vld [vmem:[#allocation2 + $0xe8] sm:$0xff]
          %v1323 = vld [vmem:[#allocation2 + $0xf0] sm:$0xff]
          %v1324 = vld [vmem:[#allocation2 + $0xf8] sm:$0xff]
          %v1325 = vld [vmem:[#allocation2 + $0x100] sm:$0xff]
          %v1326 = vld [vmem:[#allocation2 + $0x108] sm:$0xff]
          %v1327 = vld [vmem:[#allocation2 + $0x110] sm:$0xff]
          %v1328 = vld [vmem:[#allocation2 + $0x118] sm:$0xff]
          %v1329 = vld [vmem:[#allocation2 + $0x120] sm:$0xff]
          %v1330 = vld [vmem:[#allocation2 + $0x128] sm:$0xff]
          %v1331 = vld [vmem:[#allocation2 + $0x130] sm:$0xff]
          %v1332 = vld [vmem:[#allocation2 + $0x138] sm:$0xff]
          %v1333 = vld [vmem:[#allocation2 + $0x140] sm:$0xff]
          %v1334 = vld [vmem:[#allocation2 + $0x148] sm:$0xff]
          %v1335 = vld [vmem:[#allocation2 + $0x150] sm:$0xff]
          %v1336 = vld [vmem:[#allocation2 + $0x158] sm:$0xff]
          %v1337 = vld [vmem:[#allocation2 + $0x160] sm:$0xff]
          %v1338 = vld [vmem:[#allocation2 + $0x168] sm:$0xff]
          %v1339 = vld [vmem:[#allocation2 + $0x170] sm:$0xff]
          %v1340 = vld [vmem:[#allocation2 + $0x178] sm:$0xff]
          %v1341 = vld [vmem:[#allocation2 + $0x180] sm:$0xff]
          %v1342 = vld [vmem:[#allocation2 + $0x188] sm:$0xff]
          %v1343 = vld [vmem:[#allocation2 + $0x190] sm:$0xff]
          %v1344 = vld [vmem:[#allocation2 + $0x198] sm:$0xff]
          %v1345 = vld [vmem:[#allocation2 + $0x1a0] sm:$0xff]
          %v1346 = vld [vmem:[#allocation2 + $0x1a8] sm:$0xff]
          %v1347 = vld [vmem:[#allocation2 + $0x1b0] sm:$0xff]
          %v1348 = vld [vmem:[#allocation2 + $0x1b8] sm:$0xff]
          %v1349 = vld [vmem:[#allocation2 + $0x1c0] sm:$0xff]
          %v1350 = vld [vmem:[#allocation2 + $0x1c8] sm:$0xff]
          %v1351 = vld [vmem:[#allocation2 + $0x1d0] sm:$0xff]
          %v1352 = vld [vmem:[#allocation2 + $0x1d8] sm:$0xff]
          %v1353 = vld [vmem:[#allocation2 + $0x1e0] sm:$0xff]
          %v1354 = vld [vmem:[#allocation2 + $0x1e8] sm:$0xff]
          %v1355 = vld [vmem:[#allocation2 + $0x1f0] sm:$0xff]
          %v1356 = vld [vmem:[#allocation2 + $0x1f8] sm:$0xff]
          %v1357 = vld [vmem:[%s254] sm:$0x3]
          %v1359 = vperm.slane %v1357, 0
          %v1360 = vperm.slane %v1357, 1
          %v1363 = vadd.f32 %v1293, %v1359
          %v1364 = vadd.f32 %v1294, %v1360
          %v1365 = vadd.f32 %v1295, %v1359
          %v1366 = vadd.f32 %v1296, %v1360
          %v1367 = vadd.f32 %v1297, %v1359
          %v1368 = vadd.f32 %v1298, %v1360
          %v1369 = vadd.f32 %v1299, %v1359
          %v1370 = vadd.f32 %v1300, %v1360
          %v1371 = vadd.f32 %v1301, %v1359
          %v1372 = vadd.f32 %v1302, %v1360
          %v1373 = vadd.f32 %v1303, %v1359
          %v1374 = vadd.f32 %v1304, %v1360
          %v1375 = vadd.f32 %v1305, %v1359
          %v1376 = vadd.f32 %v1306, %v1360
          %v1377 = vadd.f32 %v1307, %v1359
          %v1378 = vadd.f32 %v1308, %v1360
          %v1379 = vadd.f32 %v1309, %v1359
          %v1380 = vadd.f32 %v1310, %v1360
          %v1381 = vadd.f32 %v1311, %v1359
          %v1382 = vadd.f32 %v1312, %v1360
          %v1383 = vadd.f32 %v1313, %v1359
          %v1384 = vadd.f32 %v1314, %v1360
          %v1385 = vadd.f32 %v1315, %v1359
          %v1386 = vadd.f32 %v1316, %v1360
          %v1387 = vadd.f32 %v1317, %v1359
          %v1388 = vadd.f32 %v1318, %v1360
          %v1389 = vadd.f32 %v1319, %v1359
          %v1390 = vadd.f32 %v1320, %v1360
          %v1391 = vadd.f32 %v1321, %v1359
          %v1392 = vadd.f32 %v1322, %v1360
          %v1393 = vadd.f32 %v1323, %v1359
          %v1394 = vadd.f32 %v1324, %v1360
          %v1395 = vadd.f32 %v1325, %v1359
          %v1396 = vadd.f32 %v1326, %v1360
          %v1397 = vadd.f32 %v1327, %v1359
          %v1398 = vadd.f32 %v1328, %v1360
          %v1399 = vadd.f32 %v1329, %v1359
          %v1400 = vadd.f32 %v1330, %v1360
          %v1401 = vadd.f32 %v1331, %v1359
          %v1402 = vadd.f32 %v1332, %v1360
          %v1403 = vadd.f32 %v1333, %v1359
          %v1404 = vadd.f32 %v1334, %v1360
          %v1405 = vadd.f32 %v1335, %v1359
          %v1406 = vadd.f32 %v1336, %v1360
          %v1407 = vadd.f32 %v1337, %v1359
          %v1408 = vadd.f32 %v1338, %v1360
          %v1409 = vadd.f32 %v1339, %v1359
          %v1410 = vadd.f32 %v1340, %v1360
          %v1411 = vadd.f32 %v1341, %v1359
          %v1412 = vadd.f32 %v1342, %v1360
          %v1413 = vadd.f32 %v1343, %v1359
          %v1414 = vadd.f32 %v1344, %v1360
          %v1415 = vadd.f32 %v1345, %v1359
          %v1416 = vadd.f32 %v1346, %v1360
          %v1417 = vadd.f32 %v1347, %v1359
          %v1418 = vadd.f32 %v1348, %v1360
          %v1419 = vadd.f32 %v1349, %v1359
          %v1420 = vadd.f32 %v1350, %v1360
          %v1421 = vadd.f32 %v1351, %v1359
          %v1422 = vadd.f32 %v1352, %v1360
          %v1423 = vadd.f32 %v1353, %v1359
          %v1424 = vadd.f32 %v1354, %v1360
          %v1425 = vadd.f32 %v1355, %v1359
          %v1426 = vadd.f32 %v1356, %v1360
          %v1427 = vpack.c.bf16 %v1364, %v1363
          %v1428 = vpack.c.bf16 %v1366, %v1365
          %v1429 = vpack.c.bf16 %v1368, %v1367
          %v1430 = vpack.c.bf16 %v1370, %v1369
          %v1431 = vpack.c.bf16 %v1372, %v1371
          %v1432 = vpack.c.bf16 %v1374, %v1373
          %v1433 = vpack.c.bf16 %v1376, %v1375
          %v1434 = vpack.c.bf16 %v1378, %v1377
          %v1435 = vpack.c.bf16 %v1380, %v1379
          %v1436 = vpack.c.bf16 %v1382, %v1381
          %v1437 = vpack.c.bf16 %v1384, %v1383
          %v1438 = vpack.c.bf16 %v1386, %v1385
          %v1439 = vpack.c.bf16 %v1388, %v1387
          %v1440 = vpack.c.bf16 %v1390, %v1389
          %v1441 = vpack.c.bf16 %v1392, %v1391
          %v1442 = vpack.c.bf16 %v1394, %v1393
          %v1443 = vpack.c.bf16 %v1396, %v1395
          %v1444 = vpack.c.bf16 %v1398, %v1397
          %v1445 = vpack.c.bf16 %v1400, %v1399
          %v1446 = vpack.c.bf16 %v1402, %v1401
          %v1447 = vpack.c.bf16 %v1404, %v1403
          %v1448 = vpack.c.bf16 %v1406, %v1405
          %v1449 = vpack.c.bf16 %v1408, %v1407
          %v1450 = vpack.c.bf16 %v1410, %v1409
          %v1451 = vpack.c.bf16 %v1412, %v1411
          %v1452 = vpack.c.bf16 %v1414, %v1413
          %v1453 = vpack.c.bf16 %v1416, %v1415
          %v1454 = vpack.c.bf16 %v1418, %v1417
          %v1455 = vpack.c.bf16 %v1420, %v1419
          %v1456 = vpack.c.bf16 %v1422, %v1421
          %v1457 = vpack.c.bf16 %v1424, %v1423
          %v1458 = vpack.c.bf16 %v1426, %v1425
          %1459 = vst [vmem:[%s282] sm:$0xff] %v1427
          %1460 = vst [vmem:[%s282 + $0x8] sm:$0xff] %v1428
          %1461 = vst [vmem:[%s282 + $0x10] sm:$0xff] %v1429
          %1462 = vst [vmem:[%s282 + $0x18] sm:$0xff] %v1430
          %1463 = vst [vmem:[%s282 + $0x20] sm:$0xff] %v1431
          %1464 = vst [vmem:[%s282 + $0x28] sm:$0xff] %v1432
          %1465 = vst [vmem:[%s282 + $0x30] sm:$0xff] %v1433
          %1466 = vst [vmem:[%s282 + $0x38] sm:$0xff] %v1434
          %1467 = vst [vmem:[%s282 + $0x40] sm:$0xff] %v1435
          %1468 = vst [vmem:[%s282 + $0x48] sm:$0xff] %v1436
          %1469 = vst [vmem:[%s282 + $0x50] sm:$0xff] %v1437
          %1470 = vst [vmem:[%s282 + $0x58] sm:$0xff] %v1438
          %1471 = vst [vmem:[%s282 + $0x60] sm:$0xff] %v1439
          %1472 = vst [vmem:[%s282 + $0x68] sm:$0xff] %v1440
          %1473 = vst [vmem:[%s282 + $0x70] sm:$0xff] %v1441
          %1474 = vst [vmem:[%s282 + $0x78] sm:$0xff] %v1442
          %1475 = vst [vmem:[%s282 + $0x80] sm:$0xff] %v1443
          %1476 = vst [vmem:[%s282 + $0x88] sm:$0xff] %v1444
          %1477 = vst [vmem:[%s282 + $0x90] sm:$0xff] %v1445
          %1478 = vst [vmem:[%s282 + $0x98] sm:$0xff] %v1446
          %1479 = vst [vmem:[%s282 + $0xa0] sm:$0xff] %v1447
          %1480 = vst [vmem:[%s282 + $0xa8] sm:$0xff] %v1448
          %1481 = vst [vmem:[%s282 + $0xb0] sm:$0xff] %v1449
          %1482 = vst [vmem:[%s282 + $0xb8] sm:$0xff] %v1450
          %1483 = vst [vmem:[%s282 + $0xc0] sm:$0xff] %v1451
          %1484 = vst [vmem:[%s282 + $0xc8] sm:$0xff] %v1452
          %1485 = vst [vmem:[%s282 + $0xd0] sm:$0xff] %v1453
          %1486 = vst [vmem:[%s282 + $0xd8] sm:$0xff] %v1454
          %1487 = vst [vmem:[%s282 + $0xe0] sm:$0xff] %v1455
          %1488 = vst [vmem:[%s282 + $0xe8] sm:$0xff] %v1456
          %1489 = vst [vmem:[%s282 + $0xf0] sm:$0xff] %v1457
          %1490 = vst [vmem:[%s282 + $0xf8] sm:$0xff] %v1458
        $region52: #{tpu_custom_call.1} parent=31 // pred_fallthru
          _
        %s1491 = sand.u32 %s132, 1
        %s1492 = scalar_lea.sflag [#allocation5], %s1491
        %s1493 = sand.u32 %s132, 1
        %s1494 = smul.addr %s1493, 256
        %s1495 = scalar_lea.vmem [#allocation9], %s1494
        // Predicated region
        $region53: #{tpu_custom_call.1} parent=31 // pred_check
          %p1496 = pneg %p142
        $region54: #{tpu_custom_call.1} parent=31 // pred_check_branch
          %1498 = sbr.rel (%p1496) target = $region56
        $region55: #{tpu_custom_call.1} parent=31 // pred_region
          %s1499 = smul.u32 32, %s26
          %s1500 = smul.u32 2, %s27
          %1502 = vsyncadd %s1492, 0
          %s1503 = smul.addr %s1499, 6
          %s1504 = sadd.s32 %s1500, %s1503
          %s1505 = smul.addr %s1504, 4
          %s1506 = scalar_lea.hbm %s3, %s1505
          %s1507 = sshll.u32 %s1495, 4
          %s1508 = int_to_ptr.vmem [resolvable:$true] %s1507
          %s1509 = sshll.u32 %s1506, 4
          %s1510 = int_to_ptr.hbm [resolvable:$true] %s1509
          %1515 = dma.vmem_to_hbm [thread:$0]  %s1508, 4096, %s1510, %s1492, 128, 384, 8
        $region56: #{tpu_custom_call.1} parent=31 // pred_fallthru
          _
      $region32: #{tpu_custom_call.1} parent=5 // pred_fallthru
        _
      %p1516 = scmp.le.s32.totalorder 2, %s16
      // Predicated region
      $region57: #{tpu_custom_call.1} parent=5 // pred_check
        %p1517 = pneg %p1516
      $region58: #{tpu_custom_call.1} parent=5 // pred_check_branch
        %1519 = sbr.rel (%p1517) target = $region60
      $region59: #{tpu_custom_call.1} parent=5 // pred_region
        %s1520 = ssub.s32 %s16, 2
        // Predicated region
        $region61: #{tpu_custom_call.1} parent=59 // pred_check
          %p1521 = pneg %p148
        $region62: #{tpu_custom_call.1} parent=59 // pred_check_branch
          %1523 = sbr.rel (%p1521) target = $region64
        $region63: #{tpu_custom_call.1} parent=59 // pred_region
          %s1524 = sand.u32 %s133, 1
          %s1525 = scalar_lea.sflag [#allocation5], %s1524
          %s1526 = sand.u32 %s133, 1
          %s1527 = smul.addr %s1526, 256
          %s1528 = scalar_lea.vmem [#allocation9], %s1527
          %1530 = dma.done %s1525, 4096
        $region64: #{tpu_custom_call.1} parent=59 // pred_fallthru
          _
      $region60: #{tpu_custom_call.1} parent=5 // pred_fallthru
        _
    $region6: #{tpu_custom_call.1} parent=1 // loop_footer
      %s20 = sadd.s32 1, %s16
    $region7: #{tpu_custom_call.1} parent=1 // loop_footer_branch
      %15 = sbr.rel target = $region3
    $region8: #{tpu_custom_call.1} parent=1 // loop_exit
      _
    %1531 = vsyncpa [#allocation4], 1
    %s1532 = scalar_lea.sflag [#allocation4], 1
    %1533 = vsyncpa %s1532, 1
    %1534 = vsyncpa [#allocation7], 1
    %s1535 = scalar_lea.sflag [#allocation7], 1
    %1536 = vsyncpa %s1535, 1
    %1537 = vsyncpa [#allocation5], 1
    %s1538 = scalar_lea.sflag [#allocation5], 1
    %1539 = vsyncpa %s1538, 1

</llo_original>
